<compile_context>
chip_gen: v7x
topology: tpu7x:2x2x1
jax: 0.10.0
libtpu: 0.0.40
codegen_flags: <defaults>
</compile_context>

<pallas_src>
import functools

import jax
import jax.numpy as jnp
import numpy as np
from jax.experimental import pallas as pl
from jax.experimental.pallas import tpu as pltpu


# ---------------------------------------------------------------------------
# In-kernel helpers (pure VPU/EUP/MXU ops, traced into the kernel body)
# ---------------------------------------------------------------------------
def _layernorm(h, gamma, beta, ln_eps=1e-5):
    # ln_eps is the PyTorch nn.LayerNorm default eps; it is distinct from the
    # module's `epsilon` argument (which is only the sigmoid-output clip floor).
    mean = jnp.mean(h, axis=-1, keepdims=True)
    var = jnp.mean(jnp.square(h - mean), axis=-1, keepdims=True)
    return (h - mean) * jax.lax.rsqrt(var + ln_eps) * gamma + beta


def _gelu_exact(x):
    # torch.nn.GELU() default is the exact erf-based GELU.
    return 0.5 * x * (1.0 + jax.lax.erf(x * jnp.float32(1.0 / np.sqrt(2.0))))


# ---------------------------------------------------------------------------
# Pallas kernel: full MLP head for one (batch-block, candidate-tile) grid step
# ---------------------------------------------------------------------------
def retriever_kernel(cand_ref, ubias_ref, w1c_ref, g1_ref, be1_ref,
                     w2_ref, b2_ref, g2_ref, be2_ref, w3_ref, scal_ref,
                     s_ref, w_ref, *, inv_temp, epsilon):
    bb, tn, d = cand_ref.shape
    hdim = w1c_ref.shape[1]
    cdt = w1c_ref.dtype          # matmul operand dtype (bf16 or f32)

    if bb == 1:
        # --- main path (medium / large N): one candidate tile ---------------
        c = cand_ref[0].astype(cdt)                                   # (tn, D)
        # Layer 1: candidate half only; user half + b1 pre-folded into ubias.
        h = jnp.dot(c, w1c_ref[...], preferred_element_type=jnp.float32)
        h = h + ubias_ref[0]                                          # (1, H)
        h = _gelu_exact(_layernorm(h, g1_ref[...], be1_ref[...]))
        # Layer 2
        h = jnp.dot(h.astype(cdt), w2_ref[...],
                    preferred_element_type=jnp.float32) + b2_ref[...]
        h = _gelu_exact(_layernorm(h, g2_ref[...], be2_ref[...]))     # f32
        # Lane-dense score row: (1,H) . (tn,H)^T -> (1,tn)  (q@k^T pattern).
        s_row = jax.lax.dot_general(w3_ref[...], h, (((1,), (1,)), ((), ())),
                                    preferred_element_type=jnp.float32)
        s_row = s_row.reshape(1, 1, tn)
    else:
        # --- small-N path: fold bb batch rows into the MXU M dimension ------
        c = cand_ref[...].astype(cdt).reshape(bb * tn, d)
        h = jnp.dot(c, w1c_ref[...], preferred_element_type=jnp.float32)
        h = h.reshape(bb, tn, hdim) + ubias_ref[...]                  # (bb,1,H)
        h = _gelu_exact(_layernorm(h, g1_ref[...], be1_ref[...]))
        h = jnp.dot(h.reshape(bb * tn, hdim).astype(cdt), w2_ref[...],
                    preferred_element_type=jnp.float32) + b2_ref[...]
        h = _gelu_exact(_layernorm(h, g2_ref[...], be2_ref[...]))
        h = h.reshape(bb, tn, hdim)
        # Batched q@k^T (q=1) keeps the score lane-dense per batch row.
        w3b = jnp.broadcast_to(w3_ref[...].reshape(1, 1, hdim), (bb, 1, hdim))
        s_row = jnp.einsum('bqh,bnh->bqn', w3b, h,
                           preferred_element_type=jnp.float32)        # (bb,1,tn)

    s_row = s_row + scal_ref[0]                                       # + b3 (SMEM)
    w_row = jax.nn.sigmoid((s_row - scal_ref[1]) * inv_temp)          # tau (SMEM)
    w_row = jnp.clip(w_row, epsilon, 1.0)

    s_ref[...] = s_row
    w_ref[...] = w_row


# ---------------------------------------------------------------------------
# Wrapper helpers
# ---------------------------------------------------------------------------
def _tpu_vmem_capacity_bytes():
    try:
        return int(pltpu.get_tpu_info().vmem_capacity_bytes)
    except Exception:
        return 64 << 20          # conservative (v7x-sized) default


def _pick_batch_block(B, N, tile_n_max):
    """Fold batch rows into the matmul M dim for tiny N (MXU M-underfill fix).

    Keeps B // bb >= 2 when possible so the 2-step+ grid still balances both
    TensorCores on v7x, and requires N % 8 == 0 so in-kernel reshapes stay
    sublane-aligned.
    """
    if N % 8 != 0:
        return 1
    target = max(1, 256 // N)            # aim for ~256-row MXU tiles
    bb = 1
    for d in range(1, B + 1):
        if (B % d == 0 and d <= target and d * N <= tile_n_max
                and (B // d >= 2 or B == 1)):
            bb = d
    return bb


# ---------------------------------------------------------------------------
# Wrapper: tiny glue in plain JAX, hot path in Pallas
# ---------------------------------------------------------------------------
def retriever_head(e_u, cand_emb, params, tau_temp=0.1, epsilon=1e-5,
                   temp=0.05, *, compute_dtype=jnp.bfloat16, tile_n_max=None):
    del temp  # present-but-unused in the PyTorch forward as well
    B, N, D = cand_emb.shape
    (w1, b1, g1, be1, w2, b2, g2, be2, w3, b3, tau) = params
    H = w1.shape[1]

    vmem_cap = _tpu_vmem_capacity_bytes()
    if tile_n_max is None:
        # 1024-row tiles on 128 MiB VMEM parts (v5e/v6e), 512 on 64 MiB (v7x).
        tile_n_max = 1024 if vmem_cap >= (100 << 20) else 512
    assert tile_n_max % 128 == 0 and tile_n_max >= 128

    # Split the first Linear: rows [:D] multiply the (broadcast) user embedding,
    # rows [D:] multiply the candidates.  The user half collapses to a per-batch
    # (B, 1, H) term (+ b1) computed once here in f32 -- no (M, 2D) concat slab.
    w1_user, w1_cand = w1[:D], w1[D:]
    u_bias = (e_u.astype(jnp.float32) @ w1_user.astype(jnp.float32)
              + b1.astype(jnp.float32)).reshape(B, 1, H)

    # Candidate tiling: full axis per block when N is small (with optional
    # batch folding), otherwise 128-aligned tiles; the ragged last tile is
    # handled by Pallas OOB masking -- no wrapper-side pad or dtype copy.
    if N > tile_n_max:
        tile_n, bb = tile_n_max, 1
    else:
        tile_n = N
        bb = _pick_batch_block(B, N, tile_n_max)

    cand_bytes = jnp.dtype(cand_emb.dtype).itemsize
    w_bytes = jnp.dtype(compute_dtype).itemsize
    budget = max(16 << 20, (vmem_cap * 3) // 4)

    def _vmem_estimate(tn):
        return (2 * bb * tn * D * cand_bytes            # cand tile, double-buffered
                + 2 * 2 * bb * tn * 4                   # s, w output tiles
                + 2 * (D + H) * H * w_bytes             # w1_cand + w2 (resident)
                + 4 * bb * tn * H * 4                   # f32 activation headroom
                + 2 * bb * H * 4 + 16 * H * 4)          # ubias + LN/bias vectors

    while N > tile_n_max and tile_n > 128 and _vmem_estimate(tile_n) > budget:
        tile_n //= 2
    n_tiles = pl.cdiv(N, tile_n)
    grid = (B // bb, n_tiles)

    # Weights for the two big matmuls stored in the MXU operand dtype.
    w1c = w1_cand.astype(compute_dtype)
    w2c = w2.astype(compute_dtype)
    w3t = w3.reshape(1, H).astype(jnp.float32)          # final projection in f32
    scalars = jnp.concatenate([b3.reshape(1), tau.reshape(1)]).astype(jnp.float32)

    kernel = functools.partial(retriever_kernel,
                               inv_temp=float(1.0 / tau_temp),
                               epsilon=float(epsilon))
    out_shape = (jax.ShapeDtypeStruct((B, 1, N), jnp.float32),
                 jax.ShapeDtypeStruct((B, 1, N), jnp.float32))
    weight_shapes = [(D, H), (1, H), (1, H), (H, H), (1, H), (1, H), (1, H), (1, H)]

    def _call(single_buffer_weights):
        pipe = ({'pipeline_mode': pl.Buffered(1)}       # constant blocks: 1 buffer
                if single_buffer_weights else {})

        def const_spec(shp):
            return pl.BlockSpec(shp, lambda b, n: (0,) * len(shp), **pipe)

        in_specs = ([
            pl.BlockSpec((bb, tile_n, D), lambda b, n: (b, n, 0)),    # cand tile
            pl.BlockSpec((bb, 1, H), lambda b, n: (b, 0, 0)),         # user term + b1
        ] + [const_spec(s) for s in weight_shapes] + [
            pl.BlockSpec(memory_space=pltpu.MemorySpace.SMEM),        # [b3, tau]
        ])
        out_specs = [pl.BlockSpec((bb, 1, tile_n), lambda b, n: (b, 0, n)),
                     pl.BlockSpec((bb, 1, tile_n), lambda b, n: (b, 0, n))]

        return pl.pallas_call(
            kernel,
            out_shape=out_shape,
            grid_spec=pltpu.PrefetchScalarGridSpec(
                num_scalar_prefetch=0, grid=grid,
                in_specs=in_specs, out_specs=out_specs),
            compiler_params=pltpu.CompilerParams(
                dimension_semantics=("parallel", "parallel"),
                vmem_limit_bytes=int(min(budget, 100 << 20))),
        )(cand_emb, u_bias, w1c,
          g1.astype(jnp.float32), be1.astype(jnp.float32),
          w2c, b2.astype(jnp.float32),
          g2.astype(jnp.float32), be2.astype(jnp.float32),
          w3t, scalars)

    try:
        s_out, w_out = _call(True)
    except Exception:
        # pipeline_mode=pl.Buffered(1) not supported by this JAX/Mosaic build:
        # fall back to default double-buffered weight blocks.
        s_out, w_out = _call(False)

    return s_out[:, 0, :], w_out[:, 0, :]


# ---------------------------------------------------------------------------
# Deterministic parameter init (shapes from RetrieverHead.__init__)
# ---------------------------------------------------------------------------
def init_params(key, emb_dim, hidden_dim):
    d_in = emb_dim * 2
    k1, k2, k3, k4, k5 = jax.random.split(key, 5)
    w1 = jax.random.normal(k1, (d_in, hidden_dim), jnp.float32) / np.sqrt(d_in)
    b1 = 0.01 * jax.random.normal(k2, (1, hidden_dim), jnp.float32)
    g1 = jnp.ones((1, hidden_dim), jnp.float32)
    be1 = jnp.zeros((1, hidden_dim), jnp.float32)
    w2 = jax.random.normal(k3, (hidden_dim, hidden_dim), jnp.float32) / np.sqrt(hidden_dim)
    b2 = 0.01 * jax.random.normal(k4, (1, hidden_dim), jnp.float32)
    g2 = jnp.ones((1, hidden_dim), jnp.float32)
    be2 = jnp.zeros((1, hidden_dim), jnp.float32)
    w3 = jax.random.normal(k5, (hidden_dim, 1), jnp.float32) / np.sqrt(hidden_dim)
    b3 = jnp.zeros((1, 1), jnp.float32)
    tau = jnp.zeros((1, 1), jnp.float32)               # nn.Parameter(torch.tensor(0.0))
    return (w1, b1, g1, be1, w2, b2, g2, be2, w3, b3, tau)


# ---------------------------------------------------------------------------
# Pure-JAX reference (mirrors the PyTorch forward in eval mode, f32)
# ---------------------------------------------------------------------------
def reference(e_u, cand_emb, params, tau_temp=0.1, epsilon=1e-5):
    (w1, b1, g1, be1, w2, b2, g2, be2, w3, b3, tau) = params
    B, N, D = cand_emb.shape
    u = jnp.broadcast_to(e_u[:, None, :], (B, N, D))
    x = jnp.concatenate([u, cand_emb], axis=-1).astype(jnp.float32)
    h = x @ w1 + b1[0]
    h = _gelu_exact(_layernorm(h, g1[0], be1[0]))
    h = h @ w2 + b2[0]
    h = _gelu_exact(_layernorm(h, g2[0], be2[0]))
    s = (h @ w3)[..., 0] + b3[0, 0]
    w = jax.nn.sigmoid((s - tau[0, 0]) / tau_temp)
    w = jnp.clip(w, epsilon, 1.0)
    return s, w


if __name__ == "__main__":
    key = jax.random.PRNGKey(0)

    def run_case(B, N, emb_dim, hidden_dim, tile_n_max, compute_dtype,
                 s_rtol, s_atol, w_atol):
        ks = jax.random.split(jax.random.fold_in(key, 1000 * N + B), 3)
        e_u = jax.random.normal(ks[0], (B, emb_dim), jnp.float32)
        cand_emb = jax.random.normal(ks[1], (B, N, emb_dim), jnp.float32)
        params = init_params(ks[2], emb_dim, hidden_dim)

        s, w = retriever_head(e_u, cand_emb, params, tau_temp=0.1, epsilon=1e-5,
                              compute_dtype=compute_dtype, tile_n_max=tile_n_max)
        jax.block_until_ready((s, w))

        s_ref, w_ref = reference(e_u, cand_emb, params, tau_temp=0.1, epsilon=1e-5)
        np.testing.assert_allclose(np.asarray(s), np.asarray(s_ref),
                                   rtol=s_rtol, atol=s_atol)
        np.testing.assert_allclose(np.asarray(w), np.asarray(w_ref),
                                   rtol=0.0, atol=w_atol)

    # f32 compute path: validates exact module semantics (the split first
    # Linear only changes summation order).  Covers the batch-folded small-N
    # path (B=4, N=8 -> bb=2) and the multi-tile ragged path (N=200, tiles=128).
    run_case(B=4, N=8, emb_dim=16, hidden_dim=32, tile_n_max=512,
             compute_dtype=jnp.float32, s_rtol=2e-4, s_atol=2e-4, w_atol=2e-4)
    run_case(B=2, N=200, emb_dim=16, hidden_dim=32, tile_n_max=128,
             compute_dtype=jnp.float32, s_rtol=2e-4, s_atol=2e-4, w_atol=2e-4)

    # bf16 fast path (default): bf16 MXU operands / f32 accumulation.  The
    # sigmoid((s - tau)/0.1) amplifies the ~1e-2-level bf16 drift in s by 10x
    # pre-sigmoid, hence the loose tolerance on w.
    run_case(B=4, N=8, emb_dim=16, hidden_dim=32, tile_n_max=512,
             compute_dtype=jnp.bfloat16, s_rtol=0.05, s_atol=0.1, w_atol=0.25)
    run_case(B=2, N=200, emb_dim=16, hidden_dim=32, tile_n_max=128,
             compute_dtype=jnp.bfloat16, s_rtol=0.05, s_atol=0.1, w_atol=0.25)

    print("KERNEL_OK")
</pallas_src>

<mosaic_0001>
module attributes {stable_mosaic.version = 11 : i64} {
  func.func @retriever_kernel(%arg0: i32, %arg1: i32, %arg2: memref<2x8x16xf32, #tpu.memory_space<vmem>>, %arg3: memref<2x1x32xf32, #tpu.memory_space<vmem>>, %arg4: memref<16x32xf32, #tpu.memory_space<vmem>>, %arg5: memref<1x32xf32, #tpu.memory_space<vmem>>, %arg6: memref<1x32xf32, #tpu.memory_space<vmem>>, %arg7: memref<32x32xf32, #tpu.memory_space<vmem>>, %arg8: memref<1x32xf32, #tpu.memory_space<vmem>>, %arg9: memref<1x32xf32, #tpu.memory_space<vmem>>, %arg10: memref<1x32xf32, #tpu.memory_space<vmem>>, %arg11: memref<1x32xf32, #tpu.memory_space<vmem>>, %arg12: memref<2xf32, #tpu.memory_space<smem>>, %arg13: memref<2x1x8xf32, #tpu.memory_space<vmem>>, %arg14: memref<2x1x8xf32, #tpu.memory_space<vmem>>) attributes {dimension_semantics = [#tpu.dimension_semantics<parallel>, #tpu.dimension_semantics<parallel>], iteration_bounds = array<i64: 2, 1>, scalar_prefetch = 0 : i64, scratch_operands = 0 : i64, tpu.core_type = #tpu.core_type<tc>, window_params = [{transform_indices = @transform_0, window_bounds = array<i64: 2, 8, 16>}, {transform_indices = @transform_1, window_bounds = array<i64: 2, 1, 32>}, {pipeline_mode = #tpu.pipeline_mode<synchronous>, transform_indices = @transform_2, window_bounds = array<i64: 16, 32>}, {pipeline_mode = #tpu.pipeline_mode<synchronous>, transform_indices = @transform_3, window_bounds = array<i64: 1, 32>}, {pipeline_mode = #tpu.pipeline_mode<synchronous>, transform_indices = @transform_4, window_bounds = array<i64: 1, 32>}, {pipeline_mode = #tpu.pipeline_mode<synchronous>, transform_indices = @transform_5, window_bounds = array<i64: 32, 32>}, {pipeline_mode = #tpu.pipeline_mode<synchronous>, transform_indices = @transform_6, window_bounds = array<i64: 1, 32>}, {pipeline_mode = #tpu.pipeline_mode<synchronous>, transform_indices = @transform_7, window_bounds = array<i64: 1, 32>}, {pipeline_mode = #tpu.pipeline_mode<synchronous>, transform_indices = @transform_8, window_bounds = array<i64: 1, 32>}, {pipeline_mode = #tpu.pipeline_mode<synchronous>, transform_indices = @transform_9, window_bounds = array<i64: 1, 32>}, {transform_indices = @transform_10, window_bounds = array<i64: 2>}, {transform_indices = @transform_11, window_bounds = array<i64: 2, 1, 8>}, {transform_indices = @transform_12, window_bounds = array<i64: 2, 1, 8>}]} {
    %c0 = arith.constant 0 : index
    %c0_0 = arith.constant 0 : index
    %c0_1 = arith.constant 0 : index
    %0 = vector.load %arg2[%c0, %c0_0, %c0_1] : memref<2x8x16xf32, #tpu.memory_space<vmem>>, vector<2x8x16xf32>
    %1 = vector.shape_cast %0 : vector<2x8x16xf32> to vector<16x16xf32>
    %c0_2 = arith.constant 0 : index
    %c0_3 = arith.constant 0 : index
    %2 = vector.load %arg4[%c0_2, %c0_3] : memref<16x32xf32, #tpu.memory_space<vmem>>, vector<16x32xf32>
    %cst = arith.constant dense<0.000000e+00> : vector<16x32xf32>
    %3 = tpu.matmul %1, %2, %cst {dimension_numbers = #tpu.dot_dimension_numbers<[1], [0], [0], [1], [0, 0, 1, 1], [], []>} : vector<16x16xf32>, vector<16x32xf32>, vector<16x32xf32> -> vector<16x32xf32>
    %4 = vector.shape_cast %3 : vector<16x32xf32> to vector<2x8x32xf32>
    %c0_4 = arith.constant 0 : index
    %c0_5 = arith.constant 0 : index
    %c0_6 = arith.constant 0 : index
    %5 = vector.load %arg3[%c0_4, %c0_5, %c0_6] : memref<2x1x32xf32, #tpu.memory_space<vmem>>, vector<2x1x32xf32>
    %6 = vector.broadcast %5 : vector<2x1x32xf32> to vector<2x8x32xf32>
    %7 = arith.addf %4, %6 : vector<2x8x32xf32>
    %c0_7 = arith.constant 0 : index
    %c0_8 = arith.constant 0 : index
    %8 = vector.load %arg5[%c0_7, %c0_8] : memref<1x32xf32, #tpu.memory_space<vmem>>, vector<1x32xf32>
    %c0_9 = arith.constant 0 : index
    %c0_10 = arith.constant 0 : index
    %9 = vector.load %arg6[%c0_9, %c0_10] : memref<1x32xf32, #tpu.memory_space<vmem>>, vector<1x32xf32>
    %cst_11 = arith.constant dense<0.000000e+00> : vector<2x8xf32>
    %10 = vector.multi_reduction <add>, %7, %cst_11 [2] : vector<2x8x32xf32> to vector<2x8xf32>
    %11 = vector.shape_cast %10 : vector<2x8xf32> to vector<2x8x1xf32>
    %cst_12 = arith.constant 3.200000e+01 : f32
    %12 = vector.broadcast %cst_12 : f32 to vector<2x8x1xf32>
    %13 = arith.divf %11, %12 : vector<2x8x1xf32>
    %14 = vector.broadcast %13 : vector<2x8x1xf32> to vector<2x8x32xf32>
    %15 = arith.subf %7, %14 : vector<2x8x32xf32>
    %16 = arith.mulf %15, %15 : vector<2x8x32xf32>
    %cst_13 = arith.constant dense<0.000000e+00> : vector<2x8xf32>
    %17 = vector.multi_reduction <add>, %16, %cst_13 [2] : vector<2x8x32xf32> to vector<2x8xf32>
    %18 = vector.shape_cast %17 : vector<2x8xf32> to vector<2x8x1xf32>
    %cst_14 = arith.constant 3.200000e+01 : f32
    %19 = vector.broadcast %cst_14 : f32 to vector<2x8x1xf32>
    %20 = arith.divf %18, %19 : vector<2x8x1xf32>
    %21 = vector.broadcast %13 : vector<2x8x1xf32> to vector<2x8x32xf32>
    %22 = arith.subf %7, %21 : vector<2x8x32xf32>
    %cst_15 = arith.constant 9.99999974E-6 : f32
    %23 = vector.broadcast %cst_15 : f32 to vector<2x8x1xf32>
    %24 = arith.addf %20, %23 : vector<2x8x1xf32>
    %25 = math.rsqrt %24 : vector<2x8x1xf32>
    %26 = vector.broadcast %25 : vector<2x8x1xf32> to vector<2x8x32xf32>
    %27 = arith.mulf %22, %26 : vector<2x8x32xf32>
    %28 = vector.shape_cast %8 : vector<1x32xf32> to vector<1x1x32xf32>
    %29 = vector.broadcast %28 : vector<1x1x32xf32> to vector<2x8x32xf32>
    %30 = arith.mulf %27, %29 : vector<2x8x32xf32>
    %31 = vector.shape_cast %9 : vector<1x32xf32> to vector<1x1x32xf32>
    %32 = vector.broadcast %31 : vector<1x1x32xf32> to vector<2x8x32xf32>
    %33 = arith.addf %30, %32 : vector<2x8x32xf32>
    %cst_16 = arith.constant 5.000000e-01 : f32
    %34 = vector.broadcast %cst_16 : f32 to vector<2x8x32xf32>
    %35 = arith.mulf %34, %33 : vector<2x8x32xf32>
    %cst_17 = arith.constant 0.707106769 : f32
    %36 = vector.broadcast %cst_17 : f32 to vector<2x8x32xf32>
    %37 = arith.mulf %33, %36 : vector<2x8x32xf32>
    %38 = math.erf %37 : vector<2x8x32xf32>
    %cst_18 = arith.constant 1.000000e+00 : f32
    %39 = vector.broadcast %cst_18 : f32 to vector<2x8x32xf32>
    %40 = arith.addf %39, %38 : vector<2x8x32xf32>
    %41 = arith.mulf %35, %40 : vector<2x8x32xf32>
    %42 = vector.shape_cast %41 : vector<2x8x32xf32> to vector<16x32xf32>
    %c0_19 = arith.constant 0 : index
    %c0_20 = arith.constant 0 : index
    %43 = vector.load %arg7[%c0_19, %c0_20] : memref<32x32xf32, #tpu.memory_space<vmem>>, vector<32x32xf32>
    %cst_21 = arith.constant dense<0.000000e+00> : vector<16x32xf32>
    %44 = tpu.matmul %42, %43, %cst_21 {dimension_numbers = #tpu.dot_dimension_numbers<[1], [0], [0], [1], [0, 0, 1, 1], [], []>} : vector<16x32xf32>, vector<32x32xf32>, vector<16x32xf32> -> vector<16x32xf32>
    %c0_22 = arith.constant 0 : index
    %c0_23 = arith.constant 0 : index
    %45 = vector.load %arg8[%c0_22, %c0_23] : memref<1x32xf32, #tpu.memory_space<vmem>>, vector<1x32xf32>
    %46 = vector.broadcast %45 : vector<1x32xf32> to vector<16x32xf32>
    %47 = arith.addf %44, %46 : vector<16x32xf32>
    %c0_24 = arith.constant 0 : index
    %c0_25 = arith.constant 0 : index
    %48 = vector.load %arg9[%c0_24, %c0_25] : memref<1x32xf32, #tpu.memory_space<vmem>>, vector<1x32xf32>
    %c0_26 = arith.constant 0 : index
    %c0_27 = arith.constant 0 : index
    %49 = vector.load %arg10[%c0_26, %c0_27] : memref<1x32xf32, #tpu.memory_space<vmem>>, vector<1x32xf32>
    %cst_28 = arith.constant dense<0.000000e+00> : vector<16xf32>
    %50 = vector.multi_reduction <add>, %47, %cst_28 [1] : vector<16x32xf32> to vector<16xf32>
    %51 = vector.shape_cast %50 : vector<16xf32> to vector<16x1xf32>
    %cst_29 = arith.constant 3.200000e+01 : f32
    %52 = vector.broadcast %cst_29 : f32 to vector<16x1xf32>
    %53 = arith.divf %51, %52 : vector<16x1xf32>
    %54 = vector.broadcast %53 : vector<16x1xf32> to vector<16x32xf32>
    %55 = arith.subf %47, %54 : vector<16x32xf32>
    %56 = arith.mulf %55, %55 : vector<16x32xf32>
    %cst_30 = arith.constant dense<0.000000e+00> : vector<16xf32>
    %57 = vector.multi_reduction <add>, %56, %cst_30 [1] : vector<16x32xf32> to vector<16xf32>
    %58 = vector.shape_cast %57 : vector<16xf32> to vector<16x1xf32>
    %cst_31 = arith.constant 3.200000e+01 : f32
    %59 = vector.broadcast %cst_31 : f32 to vector<16x1xf32>
    %60 = arith.divf %58, %59 : vector<16x1xf32>
    %61 = vector.broadcast %53 : vector<16x1xf32> to vector<16x32xf32>
    %62 = arith.subf %47, %61 : vector<16x32xf32>
    %cst_32 = arith.constant 9.99999974E-6 : f32
    %63 = vector.broadcast %cst_32 : f32 to vector<16x1xf32>
    %64 = arith.addf %60, %63 : vector<16x1xf32>
    %65 = math.rsqrt %64 : vector<16x1xf32>
    %66 = vector.broadcast %65 : vector<16x1xf32> to vector<16x32xf32>
    %67 = arith.mulf %62, %66 : vector<16x32xf32>
    %68 = vector.broadcast %48 : vector<1x32xf32> to vector<16x32xf32>
    %69 = arith.mulf %67, %68 : vector<16x32xf32>
    %70 = vector.broadcast %49 : vector<1x32xf32> to vector<16x32xf32>
    %71 = arith.addf %69, %70 : vector<16x32xf32>
    %cst_33 = arith.constant 5.000000e-01 : f32
    %72 = vector.broadcast %cst_33 : f32 to vector<16x32xf32>
    %73 = arith.mulf %72, %71 : vector<16x32xf32>
    %cst_34 = arith.constant 0.707106769 : f32
    %74 = vector.broadcast %cst_34 : f32 to vector<16x32xf32>
    %75 = arith.mulf %71, %74 : vector<16x32xf32>
    %76 = math.erf %75 : vector<16x32xf32>
    %cst_35 = arith.constant 1.000000e+00 : f32
    %77 = vector.broadcast %cst_35 : f32 to vector<16x32xf32>
    %78 = arith.addf %77, %76 : vector<16x32xf32>
    %79 = arith.mulf %73, %78 : vector<16x32xf32>
    %80 = vector.shape_cast %79 : vector<16x32xf32> to vector<2x8x32xf32>
    %c0_36 = arith.constant 0 : index
    %c0_37 = arith.constant 0 : index
    %81 = vector.load %arg11[%c0_36, %c0_37] : memref<1x32xf32, #tpu.memory_space<vmem>>, vector<1x32xf32>
    %82 = vector.shape_cast %81 : vector<1x32xf32> to vector<1x1x32xf32>
    %83 = vector.shape_cast %82 : vector<1x1x32xf32> to vector<1x1x32xf32>
    %84 = vector.broadcast %83 : vector<1x1x32xf32> to vector<2x1x32xf32>
    "tpu.trace_start"() <{level = 10 : i32, message = "bqh,bnh->bqn"}> : () -> ()
    %cst_38 = arith.constant dense<0.000000e+00> : vector<2x1x8xf32>
    %85 = tpu.matmul %84, %80, %cst_38 {dimension_numbers = #tpu.dot_dimension_numbers<[2], [2], [1], [1], [0, 0, 0, 1, 1, 1], [0], [0]>} : vector<2x1x32xf32>, vector<2x8x32xf32>, vector<2x1x8xf32> -> vector<2x1x8xf32>
    "tpu.trace_stop"() : () -> ()
    %c0_39 = arith.constant 0 : index
    %86 = memref.load %arg12[%c0_39] : memref<2xf32, #tpu.memory_space<smem>>
    %87 = vector.broadcast %86 : f32 to vector<2x1x8xf32>
    %88 = arith.addf %85, %87 : vector<2x1x8xf32>
    %c1 = arith.constant 1 : index
    %89 = memref.load %arg12[%c1] : memref<2xf32, #tpu.memory_space<smem>>
    %90 = vector.broadcast %89 : f32 to vector<2x1x8xf32>
    %91 = arith.subf %88, %90 : vector<2x1x8xf32>
    %cst_40 = arith.constant 1.000000e+01 : f32
    %92 = vector.broadcast %cst_40 : f32 to vector<2x1x8xf32>
    %93 = arith.mulf %91, %92 : vector<2x1x8xf32>
    %94 = arith.negf %93 : vector<2x1x8xf32>
    %95 = math.exp %94 : vector<2x1x8xf32>
    %cst_41 = arith.constant 1.000000e+00 : f32
    %96 = vector.broadcast %cst_41 : f32 to vector<2x1x8xf32>
    %97 = arith.addf %96, %95 : vector<2x1x8xf32>
    %98 = arith.divf %96, %97 : vector<2x1x8xf32>
    %cst_42 = arith.constant 9.99999974E-6 : f32
    %cst_43 = arith.constant 1.000000e+00 : f32
    %99 = vector.broadcast %cst_42 : f32 to vector<2x1x8xf32>
    %100 = arith.maximumf %99, %98 : vector<2x1x8xf32>
    %101 = vector.broadcast %cst_43 : f32 to vector<2x1x8xf32>
    %102 = arith.minimumf %101, %100 : vector<2x1x8xf32>
    %c0_44 = arith.constant 0 : index
    %c0_45 = arith.constant 0 : index
    %c0_46 = arith.constant 0 : index
    %103 = vector.load %arg13[%c0_44, %c0_45, %c0_46] : memref<2x1x8xf32, #tpu.memory_space<vmem>>, vector<2x1x8xf32>
    tpu.vector_store %arg13[%c0_44, %c0_45, %c0_46], %88 {strides = array<i32>} : memref<2x1x8xf32, #tpu.memory_space<vmem>>, vector<2x1x8xf32>,
    %c0_47 = arith.constant 0 : index
    %c0_48 = arith.constant 0 : index
    %c0_49 = arith.constant 0 : index
    %104 = vector.load %arg14[%c0_47, %c0_48, %c0_49] : memref<2x1x8xf32, #tpu.memory_space<vmem>>, vector<2x1x8xf32>
    tpu.vector_store %arg14[%c0_47, %c0_48, %c0_49], %102 {strides = array<i32>} : memref<2x1x8xf32, #tpu.memory_space<vmem>>, vector<2x1x8xf32>,
    return
  }
  func.func @transform_0(%arg0: i32, %arg1: i32) -> (i32, i32, i32) {
    %c0_i32 = arith.constant 0 : i32
    %c0_i32_0 = arith.constant 0 : i32
    return %arg0, %arg1, %c0_i32 : i32, i32, i32
  }
  func.func @transform_1(%arg0: i32, %arg1: i32) -> (i32, i32, i32) {
    %c0_i32 = arith.constant 0 : i32
    %c0_i32_0 = arith.constant 0 : i32
    %c0_i32_1 = arith.constant 0 : i32
    return %arg0, %c0_i32, %c0_i32_0 : i32, i32, i32
  }
  func.func @transform_2(%arg0: i32, %arg1: i32) -> (i32, i32) {
    %c0_i32 = arith.constant 0 : i32
    %c0_i32_0 = arith.constant 0 : i32
    %c0_i32_1 = arith.constant 0 : i32
    return %c0_i32, %c0_i32_0 : i32, i32
  }
  func.func @transform_3(%arg0: i32, %arg1: i32) -> (i32, i32) {
    %c0_i32 = arith.constant 0 : i32
    %c0_i32_0 = arith.constant 0 : i32
    %c0_i32_1 = arith.constant 0 : i32
    return %c0_i32, %c0_i32_0 : i32, i32
  }
  func.func @transform_4(%arg0: i32, %arg1: i32) -> (i32, i32) {
    %c0_i32 = arith.constant 0 : i32
    %c0_i32_0 = arith.constant 0 : i32
    %c0_i32_1 = arith.constant 0 : i32
    return %c0_i32, %c0_i32_0 : i32, i32
  }
  func.func @transform_5(%arg0: i32, %arg1: i32) -> (i32, i32) {
    %c0_i32 = arith.constant 0 : i32
    %c0_i32_0 = arith.constant 0 : i32
    %c0_i32_1 = arith.constant 0 : i32
    return %c0_i32, %c0_i32_0 : i32, i32
  }
  func.func @transform_6(%arg0: i32, %arg1: i32) -> (i32, i32) {
    %c0_i32 = arith.constant 0 : i32
    %c0_i32_0 = arith.constant 0 : i32
    %c0_i32_1 = arith.constant 0 : i32
    return %c0_i32, %c0_i32_0 : i32, i32
  }
  func.func @transform_7(%arg0: i32, %arg1: i32) -> (i32, i32) {
    %c0_i32 = arith.constant 0 : i32
    %c0_i32_0 = arith.constant 0 : i32
    %c0_i32_1 = arith.constant 0 : i32
    return %c0_i32, %c0_i32_0 : i32, i32
  }
  func.func @transform_8(%arg0: i32, %arg1: i32) -> (i32, i32) {
    %c0_i32 = arith.constant 0 : i32
    %c0_i32_0 = arith.constant 0 : i32
    %c0_i32_1 = arith.constant 0 : i32
    return %c0_i32, %c0_i32_0 : i32, i32
  }
  func.func @transform_9(%arg0: i32, %arg1: i32) -> (i32, i32) {
    %c0_i32 = arith.constant 0 : i32
    %c0_i32_0 = arith.constant 0 : i32
    %c0_i32_1 = arith.constant 0 : i32
    return %c0_i32, %c0_i32_0 : i32, i32
  }
  func.func @transform_10(%arg0: i32, %arg1: i32) -> i32 {
    %c0_i32 = arith.constant 0 : i32
    %c0_i32_0 = arith.constant 0 : i32
    return %c0_i32 : i32
  }
  func.func @transform_11(%arg0: i32, %arg1: i32) -> (i32, i32, i32) {
    %c0_i32 = arith.constant 0 : i32
    %c0_i32_0 = arith.constant 0 : i32
    return %arg0, %c0_i32, %arg1 : i32, i32, i32
  }
  func.func @transform_12(%arg0: i32, %arg1: i32) -> (i32, i32, i32) {
    %c0_i32 = arith.constant 0 : i32
    %c0_i32_0 = arith.constant 0 : i32
    return %arg0, %c0_i32, %arg1 : i32, i32, i32
  }
}

module attributes {stable_mosaic.version = 11 : i64} {
  func.func @retriever_kernel(%arg0: i32, %arg1: i32, %arg2: memref<2x8x16xf32, #tpu.memory_space<vmem>>, %arg3: memref<2x1x32xf32, #tpu.memory_space<vmem>>, %arg4: memref<16x32xf32, #tpu.memory_space<vmem>>, %arg5: memref<1x32xf32, #tpu.memory_space<vmem>>, %arg6: memref<1x32xf32, #tpu.memory_space<vmem>>, %arg7: memref<32x32xf32, #tpu.memory_space<vmem>>, %arg8: memref<1x32xf32, #tpu.memory_space<vmem>>, %arg9: memref<1x32xf32, #tpu.memory_space<vmem>>, %arg10: memref<1x32xf32, #tpu.memory_space<vmem>>, %arg11: memref<1x32xf32, #tpu.memory_space<vmem>>, %arg12: memref<2xf32, #tpu.memory_space<smem>>, %arg13: memref<2x1x8xf32, #tpu.memory_space<vmem>>, %arg14: memref<2x1x8xf32, #tpu.memory_space<vmem>>) attributes {dimension_semantics = [#tpu.dimension_semantics<parallel>, #tpu.dimension_semantics<parallel>], iteration_bounds = array<i64: 2, 1>, scalar_prefetch = 0 : i64, scratch_operands = 0 : i64, tpu.core_type = #tpu.core_type<tc>, window_params = [{transform_indices = @transform_0, window_bounds = array<i64: 2, 8, 16>}, {transform_indices = @transform_1, window_bounds = array<i64: 2, 1, 32>}, {pipeline_mode = #tpu.pipeline_mode<synchronous>, transform_indices = @transform_2, window_bounds = array<i64: 16, 32>}, {pipeline_mode = #tpu.pipeline_mode<synchronous>, transform_indices = @transform_3, window_bounds = array<i64: 1, 32>}, {pipeline_mode = #tpu.pipeline_mode<synchronous>, transform_indices = @transform_4, window_bounds = array<i64: 1, 32>}, {pipeline_mode = #tpu.pipeline_mode<synchronous>, transform_indices = @transform_5, window_bounds = array<i64: 32, 32>}, {pipeline_mode = #tpu.pipeline_mode<synchronous>, transform_indices = @transform_6, window_bounds = array<i64: 1, 32>}, {pipeline_mode = #tpu.pipeline_mode<synchronous>, transform_indices = @transform_7, window_bounds = array<i64: 1, 32>}, {pipeline_mode = #tpu.pipeline_mode<synchronous>, transform_indices = @transform_8, window_bounds = array<i64: 1, 32>}, {pipeline_mode = #tpu.pipeline_mode<synchronous>, transform_indices = @transform_9, window_bounds = array<i64: 1, 32>}, {transform_indices = @transform_10, window_bounds = array<i64: 2>}, {transform_indices = @transform_11, window_bounds = array<i64: 2, 1, 8>}, {transform_indices = @transform_12, window_bounds = array<i64: 2, 1, 8>}]} {
    %c0 = arith.constant 0 : index
    %c0_0 = arith.constant 0 : index
    %c0_1 = arith.constant 0 : index
    %0 = vector.load %arg2[%c0, %c0_0, %c0_1] : memref<2x8x16xf32, #tpu.memory_space<vmem>>, vector<2x8x16xf32>
    %1 = vector.shape_cast %0 : vector<2x8x16xf32> to vector<16x16xf32>
    %c0_2 = arith.constant 0 : index
    %c0_3 = arith.constant 0 : index
    %2 = vector.load %arg4[%c0_2, %c0_3] : memref<16x32xf32, #tpu.memory_space<vmem>>, vector<16x32xf32>
    %cst = arith.constant dense<0.000000e+00> : vector<16x32xf32>
    %3 = tpu.matmul %1, %2, %cst {dimension_numbers = #tpu.dot_dimension_numbers<[1], [0], [0], [1], [0, 0, 1, 1], [], []>} : vector<16x16xf32>, vector<16x32xf32>, vector<16x32xf32> -> vector<16x32xf32>
    %4 = vector.shape_cast %3 : vector<16x32xf32> to vector<2x8x32xf32>
    %c0_4 = arith.constant 0 : index
    %c0_5 = arith.constant 0 : index
    %c0_6 = arith.constant 0 : index
    %5 = vector.load %arg3[%c0_4, %c0_5, %c0_6] : memref<2x1x32xf32, #tpu.memory_space<vmem>>, vector<2x1x32xf32>
    %6 = vector.broadcast %5 : vector<2x1x32xf32> to vector<2x8x32xf32>
    %7 = arith.addf %4, %6 : vector<2x8x32xf32>
    %c0_7 = arith.constant 0 : index
    %c0_8 = arith.constant 0 : index
    %8 = vector.load %arg5[%c0_7, %c0_8] : memref<1x32xf32, #tpu.memory_space<vmem>>, vector<1x32xf32>
    %c0_9 = arith.constant 0 : index
    %c0_10 = arith.constant 0 : index
    %9 = vector.load %arg6[%c0_9, %c0_10] : memref<1x32xf32, #tpu.memory_space<vmem>>, vector<1x32xf32>
    %cst_11 = arith.constant dense<0.000000e+00> : vector<2x8xf32>
    %10 = vector.multi_reduction <add>, %7, %cst_11 [2] : vector<2x8x32xf32> to vector<2x8xf32>
    %11 = vector.shape_cast %10 : vector<2x8xf32> to vector<2x8x1xf32>
    %cst_12 = arith.constant 3.200000e+01 : f32
    %12 = vector.broadcast %cst_12 : f32 to vector<2x8x1xf32>
    %13 = arith.divf %11, %12 : vector<2x8x1xf32>
    %14 = vector.broadcast %13 : vector<2x8x1xf32> to vector<2x8x32xf32>
    %15 = arith.subf %7, %14 : vector<2x8x32xf32>
    %16 = arith.mulf %15, %15 : vector<2x8x32xf32>
    %cst_13 = arith.constant dense<0.000000e+00> : vector<2x8xf32>
    %17 = vector.multi_reduction <add>, %16, %cst_13 [2] : vector<2x8x32xf32> to vector<2x8xf32>
    %18 = vector.shape_cast %17 : vector<2x8xf32> to vector<2x8x1xf32>
    %cst_14 = arith.constant 3.200000e+01 : f32
    %19 = vector.broadcast %cst_14 : f32 to vector<2x8x1xf32>
    %20 = arith.divf %18, %19 : vector<2x8x1xf32>
    %21 = vector.broadcast %13 : vector<2x8x1xf32> to vector<2x8x32xf32>
    %22 = arith.subf %7, %21 : vector<2x8x32xf32>
    %cst_15 = arith.constant 9.99999974E-6 : f32
    %23 = vector.broadcast %cst_15 : f32 to vector<2x8x1xf32>
    %24 = arith.addf %20, %23 : vector<2x8x1xf32>
    %25 = math.rsqrt %24 : vector<2x8x1xf32>
    %26 = vector.broadcast %25 : vector<2x8x1xf32> to vector<2x8x32xf32>
    %27 = arith.mulf %22, %26 : vector<2x8x32xf32>
    %28 = vector.shape_cast %8 : vector<1x32xf32> to vector<1x1x32xf32>
    %29 = vector.broadcast %28 : vector<1x1x32xf32> to vector<2x8x32xf32>
    %30 = arith.mulf %27, %29 : vector<2x8x32xf32>
    %31 = vector.shape_cast %9 : vector<1x32xf32> to vector<1x1x32xf32>
    %32 = vector.broadcast %31 : vector<1x1x32xf32> to vector<2x8x32xf32>
    %33 = arith.addf %30, %32 : vector<2x8x32xf32>
    %cst_16 = arith.constant 5.000000e-01 : f32
    %34 = vector.broadcast %cst_16 : f32 to vector<2x8x32xf32>
    %35 = arith.mulf %34, %33 : vector<2x8x32xf32>
    %cst_17 = arith.constant 0.707106769 : f32
    %36 = vector.broadcast %cst_17 : f32 to vector<2x8x32xf32>
    %37 = arith.mulf %33, %36 : vector<2x8x32xf32>
    %38 = math.erf %37 : vector<2x8x32xf32>
    %cst_18 = arith.constant 1.000000e+00 : f32
    %39 = vector.broadcast %cst_18 : f32 to vector<2x8x32xf32>
    %40 = arith.addf %39, %38 : vector<2x8x32xf32>
    %41 = arith.mulf %35, %40 : vector<2x8x32xf32>
    %42 = vector.shape_cast %41 : vector<2x8x32xf32> to vector<16x32xf32>
    %c0_19 = arith.constant 0 : index
    %c0_20 = arith.constant 0 : index
    %43 = vector.load %arg7[%c0_19, %c0_20] : memref<32x32xf32, #tpu.memory_space<vmem>>, vector<32x32xf32>
    %cst_21 = arith.constant dense<0.000000e+00> : vector<16x32xf32>
    %44 = tpu.matmul %42, %43, %cst_21 {dimension_numbers = #tpu.dot_dimension_numbers<[1], [0], [0], [1], [0, 0, 1, 1], [], []>} : vector<16x32xf32>, vector<32x32xf32>, vector<16x32xf32> -> vector<16x32xf32>
    %c0_22 = arith.constant 0 : index
    %c0_23 = arith.constant 0 : index
    %45 = vector.load %arg8[%c0_22, %c0_23] : memref<1x32xf32, #tpu.memory_space<vmem>>, vector<1x32xf32>
    %46 = vector.broadcast %45 : vector<1x32xf32> to vector<16x32xf32>
    %47 = arith.addf %44, %46 : vector<16x32xf32>
    %c0_24 = arith.constant 0 : index
    %c0_25 = arith.constant 0 : index
    %48 = vector.load %arg9[%c0_24, %c0_25] : memref<1x32xf32, #tpu.memory_space<vmem>>, vector<1x32xf32>
    %c0_26 = arith.constant 0 : index
    %c0_27 = arith.constant 0 : index
    %49 = vector.load %arg10[%c0_26, %c0_27] : memref<1x32xf32, #tpu.memory_space<vmem>>, vector<1x32xf32>
    %cst_28 = arith.constant dense<0.000000e+00> : vector<16xf32>
    %50 = vector.multi_reduction <add>, %47, %cst_28 [1] : vector<16x32xf32> to vector<16xf32>
    %51 = vector.shape_cast %50 : vector<16xf32> to vector<16x1xf32>
    %cst_29 = arith.constant 3.200000e+01 : f32
    %52 = vector.broadcast %cst_29 : f32 to vector<16x1xf32>
    %53 = arith.divf %51, %52 : vector<16x1xf32>
    %54 = vector.broadcast %53 : vector<16x1xf32> to vector<16x32xf32>
    %55 = arith.subf %47, %54 : vector<16x32xf32>
    %56 = arith.mulf %55, %55 : vector<16x32xf32>
    %cst_30 = arith.constant dense<0.000000e+00> : vector<16xf32>
    %57 = vector.multi_reduction <add>, %56, %cst_30 [1] : vector<16x32xf32> to vector<16xf32>
    %58 = vector.shape_cast %57 : vector<16xf32> to vector<16x1xf32>
    %cst_31 = arith.constant 3.200000e+01 : f32
    %59 = vector.broadcast %cst_31 : f32 to vector<16x1xf32>
    %60 = arith.divf %58, %59 : vector<16x1xf32>
    %61 = vector.broadcast %53 : vector<16x1xf32> to vector<16x32xf32>
    %62 = arith.subf %47, %61 : vector<16x32xf32>
    %cst_32 = arith.constant 9.99999974E-6 : f32
    %63 = vector.broadcast %cst_32 : f32 to vector<16x1xf32>
    %64 = arith.addf %60, %63 : vector<16x1xf32>
    %65 = math.rsqrt %64 : vector<16x1xf32>
    %66 = vector.broadcast %65 : vector<16x1xf32> to vector<16x32xf32>
    %67 = arith.mulf %62, %66 : vector<16x32xf32>
    %68 = vector.broadcast %48 : vector<1x32xf32> to vector<16x32xf32>
    %69 = arith.mulf %67, %68 : vector<16x32xf32>
    %70 = vector.broadcast %49 : vector<1x32xf32> to vector<16x32xf32>
    %71 = arith.addf %69, %70 : vector<16x32xf32>
    %cst_33 = arith.constant 5.000000e-01 : f32
    %72 = vector.broadcast %cst_33 : f32 to vector<16x32xf32>
    %73 = arith.mulf %72, %71 : vector<16x32xf32>
    %cst_34 = arith.constant 0.707106769 : f32
    %74 = vector.broadcast %cst_34 : f32 to vector<16x32xf32>
    %75 = arith.mulf %71, %74 : vector<16x32xf32>
    %76 = math.erf %75 : vector<16x32xf32>
    %cst_35 = arith.constant 1.000000e+00 : f32
    %77 = vector.broadcast %cst_35 : f32 to vector<16x32xf32>
    %78 = arith.addf %77, %76 : vector<16x32xf32>
    %79 = arith.mulf %73, %78 : vector<16x32xf32>
    %80 = vector.shape_cast %79 : vector<16x32xf32> to vector<2x8x32xf32>
    %c0_36 = arith.constant 0 : index
    %c0_37 = arith.constant 0 : index
    %81 = vector.load %arg11[%c0_36, %c0_37] : memref<1x32xf32, #tpu.memory_space<vmem>>, vector<1x32xf32>
    %82 = vector.shape_cast %81 : vector<1x32xf32> to vector<1x1x32xf32>
    %83 = vector.shape_cast %82 : vector<1x1x32xf32> to vector<1x1x32xf32>
    %84 = vector.broadcast %83 : vector<1x1x32xf32> to vector<2x1x32xf32>
    "tpu.trace_start"() <{level = 10 : i32, message = "bqh,bnh->bqn"}> : () -> ()
    %cst_38 = arith.constant dense<0.000000e+00> : vector<2x1x8xf32>
    %85 = tpu.matmul %84, %80, %cst_38 {dimension_numbers = #tpu.dot_dimension_numbers<[2], [2], [1], [1], [0, 0, 0, 1, 1, 1], [0], [0]>} : vector<2x1x32xf32>, vector<2x8x32xf32>, vector<2x1x8xf32> -> vector<2x1x8xf32>
    "tpu.trace_stop"() : () -> ()
    %c0_39 = arith.constant 0 : index
    %86 = memref.load %arg12[%c0_39] : memref<2xf32, #tpu.memory_space<smem>>
    %87 = vector.broadcast %86 : f32 to vector<2x1x8xf32>
    %88 = arith.addf %85, %87 : vector<2x1x8xf32>
    %c1 = arith.constant 1 : index
    %89 = memref.load %arg12[%c1] : memref<2xf32, #tpu.memory_space<smem>>
    %90 = vector.broadcast %89 : f32 to vector<2x1x8xf32>
    %91 = arith.subf %88, %90 : vector<2x1x8xf32>
    %cst_40 = arith.constant 1.000000e+01 : f32
    %92 = vector.broadcast %cst_40 : f32 to vector<2x1x8xf32>
    %93 = arith.mulf %91, %92 : vector<2x1x8xf32>
    %94 = arith.negf %93 : vector<2x1x8xf32>
    %95 = math.exp %94 : vector<2x1x8xf32>
    %cst_41 = arith.constant 1.000000e+00 : f32
    %96 = vector.broadcast %cst_41 : f32 to vector<2x1x8xf32>
    %97 = arith.addf %96, %95 : vector<2x1x8xf32>
    %98 = arith.divf %96, %97 : vector<2x1x8xf32>
    %cst_42 = arith.constant 9.99999974E-6 : f32
    %cst_43 = arith.constant 1.000000e+00 : f32
    %99 = vector.broadcast %cst_42 : f32 to vector<2x1x8xf32>
    %100 = arith.maximumf %99, %98 : vector<2x1x8xf32>
    %101 = vector.broadcast %cst_43 : f32 to vector<2x1x8xf32>
    %102 = arith.minimumf %101, %100 : vector<2x1x8xf32>
    %c0_44 = arith.constant 0 : index
    %c0_45 = arith.constant 0 : index
    %c0_46 = arith.constant 0 : index
    %103 = vector.load %arg13[%c0_44, %c0_45, %c0_46] : memref<2x1x8xf32, #tpu.memory_space<vmem>>, vector<2x1x8xf32>
    tpu.vector_store %arg13[%c0_44, %c0_45, %c0_46], %88 {strides = array<i32>} : memref<2x1x8xf32, #tpu.memory_space<vmem>>, vector<2x1x8xf32>,
    %c0_47 = arith.constant 0 : index
    %c0_48 = arith.constant 0 : index
    %c0_49 = arith.constant 0 : index
    %104 = vector.load %arg14[%c0_47, %c0_48, %c0_49] : memref<2x1x8xf32, #tpu.memory_space<vmem>>, vector<2x1x8xf32>
    tpu.vector_store %arg14[%c0_47, %c0_48, %c0_49], %102 {strides = array<i32>} : memref<2x1x8xf32, #tpu.memory_space<vmem>>, vector<2x1x8xf32>,
    return
  }
  func.func @transform_0(%arg0: i32, %arg1: i32) -> (i32, i32, i32) {
    %c0_i32 = arith.constant 0 : i32
    %c0_i32_0 = arith.constant 0 : i32
    return %arg0, %arg1, %c0_i32 : i32, i32, i32
  }
  func.func @transform_1(%arg0: i32, %arg1: i32) -> (i32, i32, i32) {
    %c0_i32 = arith.constant 0 : i32
    %c0_i32_0 = arith.constant 0 : i32
    %c0_i32_1 = arith.constant 0 : i32
    return %arg0, %c0_i32, %c0_i32_0 : i32, i32, i32
  }
  func.func @transform_2(%arg0: i32, %arg1: i32) -> (i32, i32) {
    %c0_i32 = arith.constant 0 : i32
    %c0_i32_0 = arith.constant 0 : i32
    %c0_i32_1 = arith.constant 0 : i32
    return %c0_i32, %c0_i32_0 : i32, i32
  }
  func.func @transform_3(%arg0: i32, %arg1: i32) -> (i32, i32) {
    %c0_i32 = arith.constant 0 : i32
    %c0_i32_0 = arith.constant 0 : i32
    %c0_i32_1 = arith.constant 0 : i32
    return %c0_i32, %c0_i32_0 : i32, i32
  }
  func.func @transform_4(%arg0: i32, %arg1: i32) -> (i32, i32) {
    %c0_i32 = arith.constant 0 : i32
    %c0_i32_0 = arith.constant 0 : i32
    %c0_i32_1 = arith.constant 0 : i32
    return %c0_i32, %c0_i32_0 : i32, i32
  }
  func.func @transform_5(%arg0: i32, %arg1: i32) -> (i32, i32) {
    %c0_i32 = arith.constant 0 : i32
    %c0_i32_0 = arith.constant 0 : i32
    %c0_i32_1 = arith.constant 0 : i32
    return %c0_i32, %c0_i32_0 : i32, i32
  }
  func.func @transform_6(%arg0: i32, %arg1: i32) -> (i32, i32) {
    %c0_i32 = arith.constant 0 : i32
    %c0_i32_0 = arith.constant 0 : i32
    %c0_i32_1 = arith.constant 0 : i32
    return %c0_i32, %c0_i32_0 : i32, i32
  }
  func.func @transform_7(%arg0: i32, %arg1: i32) -> (i32, i32) {
    %c0_i32 = arith.constant 0 : i32
    %c0_i32_0 = arith.constant 0 : i32
    %c0_i32_1 = arith.constant 0 : i32
    return %c0_i32, %c0_i32_0 : i32, i32
  }
  func.func @transform_8(%arg0: i32, %arg1: i32) -> (i32, i32) {
    %c0_i32 = arith.constant 0 : i32
    %c0_i32_0 = arith.constant 0 : i32
    %c0_i32_1 = arith.constant 0 : i32
    return %c0_i32, %c0_i32_0 : i32, i32
  }
  func.func @transform_9(%arg0: i32, %arg1: i32) -> (i32, i32) {
    %c0_i32 = arith.constant 0 : i32
    %c0_i32_0 = arith.constant 0 : i32
    %c0_i32_1 = arith.constant 0 : i32
    return %c0_i32, %c0_i32_0 : i32, i32
  }
  func.func @transform_10(%arg0: i32, %arg1: i32) -> i32 {
    %c0_i32 = arith.constant 0 : i32
    %c0_i32_0 = arith.constant 0 : i32
    return %c0_i32 : i32
  }
  func.func @transform_11(%arg0: i32, %arg1: i32) -> (i32, i32, i32) {
    %c0_i32 = arith.constant 0 : i32
    %c0_i32_0 = arith.constant 0 : i32
    return %arg0, %c0_i32, %arg1 : i32, i32, i32
  }
  func.func @transform_12(%arg0: i32, %arg1: i32) -> (i32, i32, i32) {
    %c0_i32 = arith.constant 0 : i32
    %c0_i32_0 = arith.constant 0 : i32
    return %arg0, %c0_i32, %arg1 : i32, i32, i32
  }
}

</mosaic_0001>

<llo_original>
// kernel: tpu_custom_call.1
$region0: #{tpu_custom_call.1}
  #allocation0 [shape = 'u32[]', space=smem, size = 0x4, offset = 0x4, fixed_abs, tag = 'smem constant byte address 0x4 - core index']
  #allocation1 [shape = 'u32[144,128]{1,0:T(1,128)}', space=vmem, size = 0x12000, scoped, tag = 'internal scratch']
  %s0 = inlined_call_operand.hbm [shape: f32[4,8,16], index: 0, kind: input, shape index: {}]
  %s1 = inlined_call_operand.hbm [shape: f32[4,1,32], index: 1, kind: input, shape index: {}]
  %s2 = inlined_call_operand.hbm [shape: f32[16,32], index: 2, kind: input, shape index: {}]
  %s3 = inlined_call_operand.vmem [shape: f32[1,32], index: 3, kind: input, shape index: {}]
  %s4 = inlined_call_operand.vmem [shape: f32[1,32], index: 4, kind: input, shape index: {}]
  %s5 = inlined_call_operand.hbm [shape: f32[32,32], index: 5, kind: input, shape index: {}]
  %s6 = inlined_call_operand.vmem [shape: f32[1,32], index: 6, kind: input, shape index: {}]
  %s7 = inlined_call_operand.vmem [shape: f32[1,32], index: 7, kind: input, shape index: {}]
  %s8 = inlined_call_operand.vmem [shape: f32[1,32], index: 8, kind: input, shape index: {}]
  %s9 = inlined_call_operand.vmem [shape: f32[1,32], index: 9, kind: input, shape index: {}]
  %s10 = inlined_call_operand.vmem [shape: f32[2], index: 10, kind: input, shape index: {}]
  %s11 = inlined_call_operand.hbm [shape: f32[4,1,8], index: 11, kind: output, shape index: {0}]
  %s12 = inlined_call_operand.hbm [shape: f32[4,1,8], index: 12, kind: output, shape index: {1}]
  %13 = xla_tuple %s11, %s12
  %s14 = sld [smem:[#allocation0]]
  $region105: #{tpu_custom_call.1} parent=0
    _
  %s16 = ssub.s32 1, %s14
  %s17 = scalar_select 0, %s16, %s14
  $region1: #{tpu_custom_call.1} parent=0
    #allocation2 [shape = 'u8[16384]{0}', space=vmem, size = 0x4000, scoped, tag = 'input window, operand 0']
    #allocation3 [shape = 's32[2]{0}', space=sflag, size = 0x8, scoped, tag = 'scoped memory for tpu_custom_call.1']
    #allocation4 [shape = 's32[2]{0}', space=sflag, size = 0x8, scoped, tag = 'scoped memory for tpu_custom_call.1']
    #allocation5 [shape = 's32[2]{0}', space=sflag, size = 0x8, scoped, tag = 'scoped memory for tpu_custom_call.1']
    #allocation6 [shape = 'u8[2048]{0}', space=vmem, size = 0x800, scoped, tag = 'input window, operand 1']
    #allocation7 [shape = 's32[2]{0}', space=sflag, size = 0x8, scoped, tag = 'scoped memory for tpu_custom_call.1']
    #allocation8 [shape = 'u8[8192]{0}', space=vmem, size = 0x2000, scoped, tag = 'input window, operand 2, single buffered']
    #allocation9 [shape = 'u8[16384]{0}', space=vmem, size = 0x4000, scoped, tag = 'input window, operand 5, single buffered']
    #allocation10 [shape = 's32[1]{0}', space=sflag, size = 0x4, scoped, tag = 'scoped memory for tpu_custom_call.1']
    #allocation11 [shape = 'u8[512]{0}', space=smem, size = 0x200, scoped, tag = 'input window, operand 10, single buffered']
    #allocation12 [shape = 'u8[2048]{0}', space=vmem, size = 0x800, scoped, tag = 'output window, operand 0']
    #allocation13 [shape = 'u8[2048]{0}', space=vmem, size = 0x800, scoped, tag = 'output window, operand 1']
    #allocation14 [shape = 's32[2]{0}', space=sflag, size = 0x8, scoped, tag = 'scoped memory for tpu_custom_call.1']
    %18 = vsyncpa [#allocation3], 0
    %s19 = scalar_lea.sflag [#allocation3], 1
    %20 = vsyncpa %s19, 0
    %21 = vsyncpa [#allocation7], 0
    %s22 = scalar_lea.sflag [#allocation7], 1
    %23 = vsyncpa %s22, 0
    %24 = vsyncpa [#allocation10], 0
    %25 = vsyncpa [#allocation5], 0
    %26 = vsyncpa [#allocation4], 0
    %s27 = scalar_lea.sflag [#allocation4], 1
    %28 = vsyncpa %s27, 0
    %29 = vsyncpa [#allocation14], 0
    %s30 = scalar_lea.sflag [#allocation14], 1
    %31 = vsyncpa %s30, 0
    loop: start=0, step=1, limit=4
    $region2: #{tpu_custom_call.1} parent=1 // loop_pre_header
      _
    $region3: #{tpu_custom_call.1} parent=1 // loop_header
      %s33 = sphi 0, %s37
      %p34 = scmp.ge.s32.totalorder %s33, 4
      %s40 = sphi 0, %s52
      %s41 = sphi 0, %s48
      %s42 = sphi 0, %s40
      %s43 = sphi 0, %s41
      %s44 = sphi 0, %s42
      %s45 = sphi 0, %s43
      %s57 = sphi 0, %s59
      %s60 = sphi 0, %s57
      %s61 = sphi 0, %s60
      %s77 = sphi 0, %s61
      %s83 = sphi 0, %s85
      %s86 = sphi 0, %s83
      %s87 = sphi 0, %s86
      %s103 = sphi 0, %s87
      %s107 = sphi 0, %s107
      %s109 = sphi 0, %s107
      %s110 = sphi 0, %s109
      %s124 = sphi 0, %s110
      %s128 = sphi 0, %s128
      %s130 = sphi 0, %s128
      %s131 = sphi 0, %s130
      %s145 = sphi 0, %s131
      %s149 = sphi 0, %s149
      %s151 = sphi 0, %s149
      %s152 = sphi 0, %s151
      %s166 = sphi 0, %s152
      %s170 = sphi 0, %s170
      %s172 = sphi 0, %s170
      %s173 = sphi 0, %s172
      %s187 = sphi 0, %s173
      %s191 = sphi 0, %s191
      %s193 = sphi 0, %s191
      %s194 = sphi 0, %s193
      %s208 = sphi 0, %s194
      %s212 = sphi 0, %s212
      %s214 = sphi 0, %s212
      %s215 = sphi 0, %s214
      %s229 = sphi 0, %s215
      %s233 = sphi 0, %s233
      %s235 = sphi 0, %s233
      %s236 = sphi 0, %s235
      %s250 = sphi 0, %s236
      %s254 = sphi 0, %s254
      %s256 = sphi 0, %s254
      %s257 = sphi 0, %s256
      %s271 = sphi 0, %s257
      %s275 = sphi 0, %s275
      %s277 = sphi 0, %s275
      %s278 = sphi 0, %s277
      %s292 = sphi 0, %s278
      %s300 = sphi 0, %s302
      %s303 = sphi 0, %s300
      %s304 = sphi 0, %s303
      %s320 = sphi 0, %s304
      %s328 = sphi 0, %s330
      %s331 = sphi 0, %s328
      %s332 = sphi 0, %s331
      %s348 = sphi 0, %s332
    $region4: #{tpu_custom_call.1} parent=1 // loop_header_branch
      %36 = sbr.rel (%p34) target = $region8
    $region5: #{tpu_custom_call.1} parent=1 // loop_body
      %s38 = ssub.s32 %s33, 1
      %s39 = ssub.s32 %s33, 2
      %s46 = sadd.s32 1, %s41
      %p47 = scmp.ge.s32.totalorder %s46, 1
      %s48 = scalar_select %p47, 0, %s46
      %s49 = sadd.s32 1, %s40
      %s50 = scalar_select %p47, %s49, %s40
      %p51 = scmp.ge.s32.totalorder %s50, 2
      %s52 = scalar_select %p51, 0, %s50
      %s53 = ssub.s32 %s40, %s52
      %s54 = ssub.s32 %s41, %s48
      %s55 = sor.u32 %s53, %s54
      %p56 = scmp.eq.s32.totalorder %s55, 0
      %s58 = sadd.s32 %s57, 1
      %s59 = scalar_select %p56, %s57, %s58
      %p62 = pneg %p56
      %p63 = scmp.eq.s32.totalorder %s33, 1
      %p64 = por %p62, %p63
      %p65 = scmp.ne.s32.totalorder %s57, %s60
      %p66 = scmp.eq.s32.totalorder %s33, 0
      %p67 = por %p65, %p66
      %p68 = scmp.ne.s32.totalorder %s57, %s60
      %p69 = scmp.eq.s32.totalorder %s38, 1
      %p70 = por %p68, %p69
      %p71 = scmp.ne.s32.totalorder %s60, %s61
      %p72 = scmp.eq.s32.totalorder %s38, 0
      %p73 = por %p71, %p72
      %p74 = scmp.ne.s32.totalorder %s60, %s61
      %p75 = scmp.eq.s32.totalorder %s39, 1
      %p76 = por %p74, %p75
      %p78 = scmp.ne.s32.totalorder %s61, %s77
      %p79 = scmp.eq.s32.totalorder %s39, 0
      %p80 = por %p78, %p79
      %s81 = ssub.s32 %s40, %s52
      %p82 = scmp.eq.s32.totalorder %s81, 0
      %s84 = sadd.s32 %s83, 1
      %s85 = scalar_select %p82, %s83, %s84
      %p88 = pneg %p82
      %p89 = scmp.eq.s32.totalorder %s33, 1
      %p90 = por %p88, %p89
      %p91 = scmp.ne.s32.totalorder %s83, %s86
      %p92 = scmp.eq.s32.totalorder %s33, 0
      %p93 = por %p91, %p92
      %p94 = scmp.ne.s32.totalorder %s83, %s86
      %p95 = scmp.eq.s32.totalorder %s38, 1
      %p96 = por %p94, %p95
      %p97 = scmp.ne.s32.totalorder %s86, %s87
      %p98 = scmp.eq.s32.totalorder %s38, 0
      %p99 = por %p97, %p98
      %p100 = scmp.ne.s32.totalorder %s86, %s87
      %p101 = scmp.eq.s32.totalorder %s39, 1
      %p102 = por %p100, %p101
      %p104 = scmp.ne.s32.totalorder %s87, %s103
      %p105 = scmp.eq.s32.totalorder %s39, 0
      %p106 = por %p104, %p105
      %s108 = sadd.s32 %s107, 1
      %p111 = scmp.eq.s32.totalorder %s33, 1
      %p112 = scmp.ne.s32.totalorder %s107, %s109
      %p113 = scmp.eq.s32.totalorder %s33, 0
      %p114 = por %p112, %p113
      %p115 = scmp.ne.s32.totalorder %s107, %s109
      %p116 = scmp.eq.s32.totalorder %s38, 1
      %p117 = por %p115, %p116
      %p118 = scmp.ne.s32.totalorder %s109, %s110
      %p119 = scmp.eq.s32.totalorder %s38, 0
      %p120 = por %p118, %p119
      %p121 = scmp.ne.s32.totalorder %s109, %s110
      %p122 = scmp.eq.s32.totalorder %s39, 1
      %p123 = por %p121, %p122
      %p125 = scmp.ne.s32.totalorder %s110, %s124
      %p126 = scmp.eq.s32.totalorder %s39, 0
      %p127 = por %p125, %p126
      %s129 = sadd.s32 %s128, 1
      %p132 = scmp.eq.s32.totalorder %s33, 1
      %p133 = scmp.ne.s32.totalorder %s128, %s130
      %p134 = scmp.eq.s32.totalorder %s33, 0
      %p135 = por %p133, %p134
      %p136 = scmp.ne.s32.totalorder %s128, %s130
      %p137 = scmp.eq.s32.totalorder %s38, 1
      %p138 = por %p136, %p137
      %p139 = scmp.ne.s32.totalorder %s130, %s131
      %p140 = scmp.eq.s32.totalorder %s38, 0
      %p141 = por %p139, %p140
      %p142 = scmp.ne.s32.totalorder %s130, %s131
      %p143 = scmp.eq.s32.totalorder %s39, 1
      %p144 = por %p142, %p143
      %p146 = scmp.ne.s32.totalorder %s131, %s145
      %p147 = scmp.eq.s32.totalorder %s39, 0
      %p148 = por %p146, %p147
      %s150 = sadd.s32 %s149, 1
      %p153 = scmp.eq.s32.totalorder %s33, 1
      %p154 = scmp.ne.s32.totalorder %s149, %s151
      %p155 = scmp.eq.s32.totalorder %s33, 0
      %p156 = por %p154, %p155
      %p157 = scmp.ne.s32.totalorder %s149, %s151
      %p158 = scmp.eq.s32.totalorder %s38, 1
      %p159 = por %p157, %p158
      %p160 = scmp.ne.s32.totalorder %s151, %s152
      %p161 = scmp.eq.s32.totalorder %s38, 0
      %p162 = por %p160, %p161
      %p163 = scmp.ne.s32.totalorder %s151, %s152
      %p164 = scmp.eq.s32.totalorder %s39, 1
      %p165 = por %p163, %p164
      %p167 = scmp.ne.s32.totalorder %s152, %s166
      %p168 = scmp.eq.s32.totalorder %s39, 0
      %p169 = por %p167, %p168
      %s171 = sadd.s32 %s170, 1
      %p174 = scmp.eq.s32.totalorder %s33, 1
      %p175 = scmp.ne.s32.totalorder %s170, %s172
      %p176 = scmp.eq.s32.totalorder %s33, 0
      %p177 = por %p175, %p176
      %p178 = scmp.ne.s32.totalorder %s170, %s172
      %p179 = scmp.eq.s32.totalorder %s38, 1
      %p180 = por %p178, %p179
      %p181 = scmp.ne.s32.totalorder %s172, %s173
      %p182 = scmp.eq.s32.totalorder %s38, 0
      %p183 = por %p181, %p182
      %p184 = scmp.ne.s32.totalorder %s172, %s173
      %p185 = scmp.eq.s32.totalorder %s39, 1
      %p186 = por %p184, %p185
      %p188 = scmp.ne.s32.totalorder %s173, %s187
      %p189 = scmp.eq.s32.totalorder %s39, 0
      %p190 = por %p188, %p189
      %s192 = sadd.s32 %s191, 1
      %p195 = scmp.eq.s32.totalorder %s33, 1
      %p196 = scmp.ne.s32.totalorder %s191, %s193
      %p197 = scmp.eq.s32.totalorder %s33, 0
      %p198 = por %p196, %p197
      %p199 = scmp.ne.s32.totalorder %s191, %s193
      %p200 = scmp.eq.s32.totalorder %s38, 1
      %p201 = por %p199, %p200
      %p202 = scmp.ne.s32.totalorder %s193, %s194
      %p203 = scmp.eq.s32.totalorder %s38, 0
      %p204 = por %p202, %p203
      %p205 = scmp.ne.s32.totalorder %s193, %s194
      %p206 = scmp.eq.s32.totalorder %s39, 1
      %p207 = por %p205, %p206
      %p209 = scmp.ne.s32.totalorder %s194, %s208
      %p210 = scmp.eq.s32.totalorder %s39, 0
      %p211 = por %p209, %p210
      %s213 = sadd.s32 %s212, 1
      %p216 = scmp.eq.s32.totalorder %s33, 1
      %p217 = scmp.ne.s32.totalorder %s212, %s214
      %p218 = scmp.eq.s32.totalorder %s33, 0
      %p219 = por %p217, %p218
      %p220 = scmp.ne.s32.totalorder %s212, %s214
      %p221 = scmp.eq.s32.totalorder %s38, 1
      %p222 = por %p220, %p221
      %p223 = scmp.ne.s32.totalorder %s214, %s215
      %p224 = scmp.eq.s32.totalorder %s38, 0
      %p225 = por %p223, %p224
      %p226 = scmp.ne.s32.totalorder %s214, %s215
      %p227 = scmp.eq.s32.totalorder %s39, 1
      %p228 = por %p226, %p227
      %p230 = scmp.ne.s32.totalorder %s215, %s229
      %p231 = scmp.eq.s32.totalorder %s39, 0
      %p232 = por %p230, %p231
      %s234 = sadd.s32 %s233, 1
      %p237 = scmp.eq.s32.totalorder %s33, 1
      %p238 = scmp.ne.s32.totalorder %s233, %s235
      %p239 = scmp.eq.s32.totalorder %s33, 0
      %p240 = por %p238, %p239
      %p241 = scmp.ne.s32.totalorder %s233, %s235
      %p242 = scmp.eq.s32.totalorder %s38, 1
      %p243 = por %p241, %p242
      %p244 = scmp.ne.s32.totalorder %s235, %s236
      %p245 = scmp.eq.s32.totalorder %s38, 0
      %p246 = por %p244, %p245
      %p247 = scmp.ne.s32.totalorder %s235, %s236
      %p248 = scmp.eq.s32.totalorder %s39, 1
      %p249 = por %p247, %p248
      %p251 = scmp.ne.s32.totalorder %s236, %s250
      %p252 = scmp.eq.s32.totalorder %s39, 0
      %p253 = por %p251, %p252
      %s255 = sadd.s32 %s254, 1
      %p258 = scmp.eq.s32.totalorder %s33, 1
      %p259 = scmp.ne.s32.totalorder %s254, %s256
      %p260 = scmp.eq.s32.totalorder %s33, 0
      %p261 = por %p259, %p260
      %p262 = scmp.ne.s32.totalorder %s254, %s256
      %p263 = scmp.eq.s32.totalorder %s38, 1
      %p264 = por %p262, %p263
      %p265 = scmp.ne.s32.totalorder %s256, %s257
      %p266 = scmp.eq.s32.totalorder %s38, 0
      %p267 = por %p265, %p266
      %p268 = scmp.ne.s32.totalorder %s256, %s257
      %p269 = scmp.eq.s32.totalorder %s39, 1
      %p270 = por %p268, %p269
      %p272 = scmp.ne.s32.totalorder %s257, %s271
      %p273 = scmp.eq.s32.totalorder %s39, 0
      %p274 = por %p272, %p273
      %s276 = sadd.s32 %s275, 1
      %p279 = scmp.eq.s32.totalorder %s33, 1
      %p280 = scmp.ne.s32.totalorder %s275, %s277
      %p281 = scmp.eq.s32.totalorder %s33, 0
      %p282 = por %p280, %p281
      %p283 = scmp.ne.s32.totalorder %s275, %s277
      %p284 = scmp.eq.s32.totalorder %s38, 1
      %p285 = por %p283, %p284
      %p286 = scmp.ne.s32.totalorder %s277, %s278
      %p287 = scmp.eq.s32.totalorder %s38, 0
      %p288 = por %p286, %p287
      %p289 = scmp.ne.s32.totalorder %s277, %s278
      %p290 = scmp.eq.s32.totalorder %s39, 1
      %p291 = por %p289, %p290
      %p293 = scmp.ne.s32.totalorder %s278, %s292
      %p294 = scmp.eq.s32.totalorder %s39, 0
      %p295 = por %p293, %p294
      %s296 = ssub.s32 %s40, %s52
      %s297 = ssub.s32 %s41, %s48
      %s298 = sor.u32 %s296, %s297
      %p299 = scmp.eq.s32.totalorder %s298, 0
      %s301 = sadd.s32 %s300, 1
      %s302 = scalar_select %p299, %s300, %s301
      %p305 = pneg %p299
      %p306 = scmp.eq.s32.totalorder %s33, 1
      %p307 = por %p305, %p306
      %p308 = scmp.ne.s32.totalorder %s300, %s303
      %p309 = scmp.eq.s32.totalorder %s33, 0
      %p310 = por %p308, %p309
      %p311 = scmp.ne.s32.totalorder %s300, %s303
      %p312 = scmp.eq.s32.totalorder %s38, 1
      %p313 = por %p311, %p312
      %p314 = scmp.ne.s32.totalorder %s303, %s304
      %p315 = scmp.eq.s32.totalorder %s38, 0
      %p316 = por %p314, %p315
      %p317 = scmp.ne.s32.totalorder %s303, %s304
      %p318 = scmp.eq.s32.totalorder %s39, 1
      %p319 = por %p317, %p318
      %p321 = scmp.ne.s32.totalorder %s304, %s320
      %p322 = scmp.eq.s32.totalorder %s39, 0
      %p323 = por %p321, %p322
      %s324 = ssub.s32 %s40, %s52
      %s325 = ssub.s32 %s41, %s48
      %s326 = sor.u32 %s324, %s325
      %p327 = scmp.eq.s32.totalorder %s326, 0
      %s329 = sadd.s32 %s328, 1
      %s330 = scalar_select %p327, %s328, %s329
      %p333 = pneg %p327
      %p334 = scmp.eq.s32.totalorder %s33, 1
      %p335 = por %p333, %p334
      %p336 = scmp.ne.s32.totalorder %s328, %s331
      %p337 = scmp.eq.s32.totalorder %s33, 0
      %p338 = por %p336, %p337
      %p339 = scmp.ne.s32.totalorder %s328, %s331
      %p340 = scmp.eq.s32.totalorder %s38, 1
      %p341 = por %p339, %p340
      %p342 = scmp.ne.s32.totalorder %s331, %s332
      %p343 = scmp.eq.s32.totalorder %s38, 0
      %p344 = por %p342, %p343
      %p345 = scmp.ne.s32.totalorder %s331, %s332
      %p346 = scmp.eq.s32.totalorder %s39, 1
      %p347 = por %p345, %p346
      %p349 = scmp.ne.s32.totalorder %s332, %s348
      %p350 = scmp.eq.s32.totalorder %s39, 0
      %p351 = por %p349, %p350
      %p352 = scmp.le.s32.totalorder 1, %s33
      %p353 = scmp.lt.s32.totalorder %s33, 3
      %p354 = pnand %p352, %p353
      %p355 = pneg %p354
      // Predicated region
      $region9: #{tpu_custom_call.1} parent=5 // pred_check
        _
      $region10: #{tpu_custom_call.1} parent=5 // pred_check_branch
        %357 = sbr.rel (%p354) target = $region12
      $region11: #{tpu_custom_call.1} parent=5 // pred_region
        %s358 = ssub.s32 %s33, 1
        // Predicated region
        $region13: #{tpu_custom_call.1} parent=11 // pred_check
          %p359 = pneg %p120
        $region14: #{tpu_custom_call.1} parent=11 // pred_check_branch
          %361 = sbr.rel (%p359) target = $region16
        $region15: #{tpu_custom_call.1} parent=11 // pred_region
          %s363 = ssub.s32 256, 256
          %364 = vsyncadd [#allocation7], %s363
          %s365 = sshll.u32 [#allocation8], 4
          %s366 = int_to_ptr.vmem [resolvable:$true] %s365
          %371 = dma.hbm_to_vmem [thread:$0]  %s2, 256, %s366, [#allocation7], 128, 128, 8
        $region16: #{tpu_custom_call.1} parent=11 // pred_fallthru
          _
        // Predicated region
        $region17: #{tpu_custom_call.1} parent=11 // pred_check
          %p372 = pneg %p141
        $region18: #{tpu_custom_call.1} parent=11 // pred_check_branch
          %374 = sbr.rel (%p372) target = $region20
        $region19: #{tpu_custom_call.1} parent=11 // pred_region
          _
        $region20: #{tpu_custom_call.1} parent=11 // pred_fallthru
          _
        // Predicated region
        $region21: #{tpu_custom_call.1} parent=11 // pred_check
          %p375 = pneg %p162
        $region22: #{tpu_custom_call.1} parent=11 // pred_check_branch
          %377 = sbr.rel (%p375) target = $region24
        $region23: #{tpu_custom_call.1} parent=11 // pred_region
          _
        $region24: #{tpu_custom_call.1} parent=11 // pred_fallthru
          _
        // Predicated region
        $region25: #{tpu_custom_call.1} parent=11 // pred_check
          %p378 = pneg %p183
        $region26: #{tpu_custom_call.1} parent=11 // pred_check_branch
          %380 = sbr.rel (%p378) target = $region28
        $region27: #{tpu_custom_call.1} parent=11 // pred_region
          %s382 = ssub.s32 512, 512
          %383 = vsyncadd [#allocation10], %s382
          %s384 = sshll.u32 [#allocation9], 4
          %s385 = int_to_ptr.vmem [resolvable:$true] %s384
          %390 = dma.hbm_to_vmem [thread:$0]  %s5, 512, %s385, [#allocation10], 128, 128, 8
        $region28: #{tpu_custom_call.1} parent=11 // pred_fallthru
          _
        // Predicated region
        $region29: #{tpu_custom_call.1} parent=11 // pred_check
          %p391 = pneg %p204
        $region30: #{tpu_custom_call.1} parent=11 // pred_check_branch
          %393 = sbr.rel (%p391) target = $region32
        $region31: #{tpu_custom_call.1} parent=11 // pred_region
          _
        $region32: #{tpu_custom_call.1} parent=11 // pred_fallthru
          _
        // Predicated region
        $region33: #{tpu_custom_call.1} parent=11 // pred_check
          %p394 = pneg %p225
        $region34: #{tpu_custom_call.1} parent=11 // pred_check_branch
          %396 = sbr.rel (%p394) target = $region36
        $region35: #{tpu_custom_call.1} parent=11 // pred_region
          _
        $region36: #{tpu_custom_call.1} parent=11 // pred_fallthru
          _
        // Predicated region
        $region37: #{tpu_custom_call.1} parent=11 // pred_check
          %p397 = pneg %p246
        $region38: #{tpu_custom_call.1} parent=11 // pred_check_branch
          %399 = sbr.rel (%p397) target = $region40
        $region39: #{tpu_custom_call.1} parent=11 // pred_region
          _
        $region40: #{tpu_custom_call.1} parent=11 // pred_fallthru
          _
        // Predicated region
        $region41: #{tpu_custom_call.1} parent=11 // pred_check
          %p400 = pneg %p267
        $region42: #{tpu_custom_call.1} parent=11 // pred_check_branch
          %402 = sbr.rel (%p400) target = $region44
        $region43: #{tpu_custom_call.1} parent=11 // pred_region
          _
        $region44: #{tpu_custom_call.1} parent=11 // pred_fallthru
          _
        // Predicated region
        $region45: #{tpu_custom_call.1} parent=11 // pred_check
          %p403 = pneg %p288
        $region46: #{tpu_custom_call.1} parent=11 // pred_check_branch
          %405 = sbr.rel (%p403) target = $region48
        $region47: #{tpu_custom_call.1} parent=11 // pred_region
          %s407 = ssub.s32 16, 16
          %408 = vsyncadd [#allocation5], %s407
          %s410 = sshll.u32 %s10, 4
          %s411 = int_to_ptr.vmem [resolvable:$true] %s410
          %413 = dma.vmem_to_smem %s411, 16, [#allocation11], [#allocation5]
        $region48: #{tpu_custom_call.1} parent=11 // pred_fallthru
          _
      $region12: #{tpu_custom_call.1} parent=5 // pred_fallthru
        _
      %p414 = scmp.lt.s32.totalorder %s33, 2
      // Predicated region
      $region49: #{tpu_custom_call.1} parent=5 // pred_check
        %p415 = pneg %p414
      $region50: #{tpu_custom_call.1} parent=5 // pred_check_branch
        %417 = sbr.rel (%p415) target = $region52
      $region51: #{tpu_custom_call.1} parent=5 // pred_region
        // Predicated region
        $region53: #{tpu_custom_call.1} parent=51 // pred_check
          %p418 = pneg %p67
        $region54: #{tpu_custom_call.1} parent=51 // pred_check_branch
          %420 = sbr.rel (%p418) target = $region56
        $region55: #{tpu_custom_call.1} parent=51 // pred_region
          %s421 = sand.u32 %s57, 1
          %s422 = scalar_lea.sflag [#allocation3], %s421
          %s423 = sand.u32 %s57, 1
          %s424 = smul.addr %s423, 16
          %s425 = scalar_lea.vmem [#allocation2], %s424
          %s426 = smul.u32 2, %s40
          %s428 = ssub.s32 256, 256
          %429 = vsyncadd %s422, %s428
          %s430 = sadd.s32 %s41, %s426
          %s431 = smul.addr %s430, 128
          %s432 = scalar_lea.hbm %s0, %s431
          %s433 = sshll.u32 %s425, 4
          %s434 = int_to_ptr.vmem [resolvable:$true] %s433
          %439 = dma.hbm_to_vmem [thread:$0]  %s432, 256, %s434, %s422, 128, 128, 8
        $region56: #{tpu_custom_call.1} parent=51 // pred_fallthru
          _
        // Predicated region
        $region57: #{tpu_custom_call.1} parent=51 // pred_check
          %p440 = pneg %p93
        $region58: #{tpu_custom_call.1} parent=51 // pred_check_branch
          %442 = sbr.rel (%p440) target = $region60
        $region59: #{tpu_custom_call.1} parent=51 // pred_region
          %s443 = sand.u32 %s33, 1
          %s444 = scalar_lea.sflag [#allocation7], %s443
          %s445 = sand.u32 %s83, 1
          %s446 = smul.addr %s445, 2
          %s447 = scalar_lea.vmem [#allocation6], %s446
          %s448 = smul.u32 2, %s40
          %s450 = ssub.s32 32, 32
          %451 = vsyncadd %s444, %s450
          %s452 = smul.addr %s448, 16
          %s453 = scalar_lea.hbm %s1, %s452
          %s454 = sshll.u32 %s447, 4
          %s455 = int_to_ptr.vmem [resolvable:$true] %s454
          %460 = dma.hbm_to_vmem [thread:$0]  %s453, 32, %s455, %s444, 16, 16, 1
        $region60: #{tpu_custom_call.1} parent=51 // pred_fallthru
          _
      $region52: #{tpu_custom_call.1} parent=5 // pred_fallthru
        _
      %p461 = scmp.le.s32.totalorder 1, %s33
      %p462 = scmp.lt.s32.totalorder %s33, 3
      %p463 = pnand %p461, %p462
      %p464 = pneg %p463
      // Predicated region
      $region61: #{tpu_custom_call.1} parent=5 // pred_check
        _
      $region62: #{tpu_custom_call.1} parent=5 // pred_check_branch
        %466 = sbr.rel (%p463) target = $region64
      $region63: #{tpu_custom_call.1} parent=5 // pred_region
        %s467 = ssub.s32 %s33, 1
        %s468 = sand.u32 %s60, 1
        %s469 = scalar_lea.sflag [#allocation3], %s468
        %s470 = sand.u32 %s60, 1
        %s471 = smul.addr %s470, 16
        %s472 = scalar_lea.vmem [#allocation2], %s471
        // Predicated region
        $region65: #{tpu_custom_call.1} parent=63 // pred_check
          %p473 = pneg %p73
        $region66: #{tpu_custom_call.1} parent=63 // pred_check_branch
          %475 = sbr.rel (%p473) target = $region68
        $region67: #{tpu_custom_call.1} parent=63 // pred_region
          %476 = dma.done %s469, 256
        $region68: #{tpu_custom_call.1} parent=63 // pred_fallthru
          _
        %s477 = sand.u32 %s38, 1
        %s478 = scalar_lea.sflag [#allocation7], %s477
        %s479 = sand.u32 %s86, 1
        %s480 = smul.addr %s479, 2
        %s481 = scalar_lea.vmem [#allocation6], %s480
        // Predicated region
        $region69: #{tpu_custom_call.1} parent=63 // pred_check
          %p482 = pneg %p99
        $region70: #{tpu_custom_call.1} parent=63 // pred_check_branch
          %484 = sbr.rel (%p482) target = $region72
        $region71: #{tpu_custom_call.1} parent=63 // pred_region
          %485 = dma.done %s478, 32
        $region72: #{tpu_custom_call.1} parent=63 // pred_fallthru
          _
        // Predicated region
        $region73: #{tpu_custom_call.1} parent=63 // pred_check
          %p486 = pneg %p120
        $region74: #{tpu_custom_call.1} parent=63 // pred_check_branch
          %488 = sbr.rel (%p486) target = $region76
        $region75: #{tpu_custom_call.1} parent=63 // pred_region
          %489 = dma.done [#allocation7], 256
        $region76: #{tpu_custom_call.1} parent=63 // pred_fallthru
          _
        // Predicated region
        $region77: #{tpu_custom_call.1} parent=63 // pred_check
          %p490 = pneg %p183
        $region78: #{tpu_custom_call.1} parent=63 // pred_check_branch
          %492 = sbr.rel (%p490) target = $region80
        $region79: #{tpu_custom_call.1} parent=63 // pred_region
          %493 = dma.done [#allocation10], 512
        $region80: #{tpu_custom_call.1} parent=63 // pred_fallthru
          _
        // Predicated region
        $region81: #{tpu_custom_call.1} parent=63 // pred_check
          %p494 = pneg %p288
        $region82: #{tpu_custom_call.1} parent=63 // pred_check_branch
          %496 = sbr.rel (%p494) target = $region84
        $region83: #{tpu_custom_call.1} parent=63 // pred_region
          %497 = dma.done [#allocation5], 16
        $region84: #{tpu_custom_call.1} parent=63 // pred_fallthru
          _
        %498 = sfence
        %s499 = sand.u32 %s60, 1
        %s500 = scalar_lea.sflag [#allocation3], %s499
        %s501 = sand.u32 %s60, 1
        %s502 = smul.addr %s501, 16
        %s503 = scalar_lea.vmem [#allocation2], %s502
        %p504 = pneg %p73
        %p505 = pneg %p70
        %s506 = sand.u32 %s38, 1
        %s507 = scalar_lea.sflag [#allocation7], %s506
        %s508 = sand.u32 %s86, 1
        %s509 = smul.addr %s508, 2
        %s510 = scalar_lea.vmem [#allocation6], %s509
        %p511 = pneg %p99
        %p512 = pneg %p96
        %p513 = pneg %p120
        %p514 = pneg %p117
        %p515 = pneg %p141
        %p516 = pneg %p138
        %p517 = pneg %p162
        %p518 = pneg %p159
        %p519 = pneg %p183
        %p520 = pneg %p180
        %p521 = pneg %p204
        %p522 = pneg %p201
        %p523 = pneg %p225
        %p524 = pneg %p222
        %p525 = pneg %p246
        %p526 = pneg %p243
        %p527 = pneg %p267
        %p528 = pneg %p264
        %p529 = pneg %p288
        %p530 = pneg %p285
        %p531 = pneg %p316
        %p532 = pneg %p313
        %s533 = sand.u32 %s303, 1
        %s534 = scalar_lea.sflag [#allocation4], %s533
        %s535 = sand.u32 %s303, 1
        %s536 = smul.addr %s535, 2
        %s537 = scalar_lea.vmem [#allocation12], %s536
        %p538 = pneg %p344
        %p539 = pneg %p341
        %s540 = sand.u32 %s331, 1
        %s541 = scalar_lea.sflag [#allocation14], %s540
        %s542 = sand.u32 %s331, 1
        %s543 = smul.addr %s542, 2
        %s544 = scalar_lea.vmem [#allocation13], %s543
        %s545 = smul.u32 2, %s42
        %s546 = smul.u32 2, %s42
        %s547 = smul.u32 2, %s42
        %s548 = smul.u32 2, %s42
        %v549 = vld [vmem:[%s472] sm:$0xff]
        %v550 = vld [vmem:[%s472 + $0x8] sm:$0xff]
        %v551 = vld [vmem:[#allocation8] sm:$0xff]
        %v552 = vld [vmem:[#allocation8 + $0x8] sm:$0xff]
        %vm553 = vcmask 130048
        %v555 = vsel %vm553, %v549, 0
        %v558 = vsel %vm553, %v550, 0
        %560 = vmatprep.subr.mxu0 0.0
        %561 = vmatpush1.msra.mxu0 %v551
        %562 = vmatprep.subr.mxu0 0.0
        %563 = vmatpush1.msra.mxu0 %v552
        %564 = vmatprep.subr.mxu0 0.0
        %565 = vmatpush1.msra.mxu0 0.0
        %566 = vmatprep.subr.mxu0 0.0
        %567 = vmatpush1.msra.mxu0 0.0
        %568 = vmatprep.subr.mxu0 0.0
        %569 = vmatpush1.msra.mxu0 0.0
        %570 = vmatprep.subr.mxu0 0.0
        %571 = vmatpush1.msra.mxu0 0.0
        %572 = vmatprep.subr.mxu0 0.0
        %573 = vmatpush1.msra.mxu0 0.0
        %574 = vmatprep.subr.mxu0 0.0
        %575 = vmatpush1.msra.mxu0 0.0
        %576 = vmatprep.subr.mxu0 0.0
        %577 = vmatpush1.msra.mxu0 0.0
        %578 = vmatprep.subr.mxu0 0.0
        %579 = vmatpush1.msra.mxu0 0.0
        %580 = vmatprep.subr.mxu0 0.0
        %581 = vmatpush1.msra.mxu0 0.0
        %582 = vmatprep.subr.mxu0 0.0
        %583 = vmatpush1.msra.mxu0 0.0
        %584 = vmatprep.subr.mxu0 0.0
        %585 = vmatpush1.msra.mxu0 0.0
        %586 = vmatprep.subr.mxu0 0.0
        %587 = vmatpush1.msra.mxu0 0.0
        %588 = vmatprep.subr.mxu0 0.0
        %589 = vmatpush1.msra.mxu0 0.0
        %590 = vmatprep.subr.mxu0 0.0
        %591 = vmatpush1.msra.mxu0 0.0
        %592 = vmatprep.subr.mxu0 0.0
        %593 = vmatpush1.msra.mxu0 0.0
        %594 = vmatprep.subr.mxu0 0.0
        %595 = vmatpush1.msra.mxu0 0.0
        %596 = vmatprep.subr.mxu0 0.0
        %597 = vmatpush1.msra.mxu0 0.0
        %598 = vmatprep.subr.mxu0 0.0
        %599 = vmatpush1.msra.mxu0 0.0
        %600 = vmatprep.subr.mxu0 0.0
        %601 = vmatpush1.msra.mxu0 0.0
        %602 = vmatprep.subr.mxu0 0.0
        %603 = vmatpush1.msra.mxu0 0.0
        %604 = vmatprep.subr.mxu0 0.0
        %605 = vmatpush1.msra.mxu0 0.0
        %606 = vmatprep.subr.mxu0 0.0
        %607 = vmatpush1.msra.mxu0 0.0
        %608 = vmatprep.subr.mxu0 0.0
        %609 = vmatpush1.msra.mxu0 0.0
        %610 = vmatprep.subr.mxu0 0.0
        %611 = vmatpush1.msra.mxu0 0.0
        %612 = vmatprep.subr.mxu0 0.0
        %613 = vmatpush1.msra.mxu0 0.0
        %614 = vmatprep.subr.mxu0 0.0
        %615 = vmatpush1.msra.mxu0 0.0
        %616 = vmatprep.subr.mxu0 0.0
        %617 = vmatpush1.msra.mxu0 0.0
        %618 = vmatprep.subr.mxu0 0.0
        %619 = vmatpush1.msra.mxu0 0.0
        %620 = vmatprep.subr.mxu0 0.0
        %621 = vmatpush1.msra.mxu0 0.0
        %622 = vmatprep.subr.mxu0 0.0
        %623 = vmatpush1.msra.mxu0 0.0
        %624 = vmatprep.mubr.f32.mxu0 0.0
        %625 = vmatmul.mubr.f32.gmra.mrb[0].mxu0 %v555
        %v626 = vpop.f32.mrb[0].mxu0
        %v627 = vadd.f32 0.0, %v626
        %v628 = vpop.f32.mrb[0].mxu0
        %629 = vmatprep.mubr.f32.mxu0 0.0
        %630 = vmatmul.mubr.f32.gmra.mrb[0].mxu0 %v558
        %v631 = vpop.f32.mrb[0].mxu0
        %v632 = vadd.f32 0.0, %v631
        %v633 = vpop.f32.mrb[0].mxu0
        %634 = vdwg.mxu0
        %v635 = vld [vmem:[%s481] sm:$0x1]
        %v636 = vld [vmem:[%s481 + $0x1] sm:$0x1]
        %v639 = vlaneseq
        %v640 = vshrl.u32 %v639, 7
        %v641 = vsub.s32 0, %v640
        %v642 = vrot.slane %v635, %v641
        %v643 = vlaneseq
        %v644 = vshrl.u32 %v643, 7
        %v645 = vsub.s32 0, %v644
        %v646 = vrot.slane %v636, %v645
        %v649 = vadd.f32 %v627, %v642
        %v650 = vadd.f32 %v632, %v646
        %v651 = vld [vmem:[%s3] sm:$0x1]
        %v652 = vld [vmem:[%s4] sm:$0x1]
        %vm653 = vcmask 261120
        %v654 = vsel %vm653, %v649, 0.0
        %655 = vadd.xlane.f32.xlu0 %v654
        %v656 = vpop.xlane.xlu0 %655
        %v657 = vsel %vm653, %v650, 0.0
        %658 = vadd.xlane.f32.xlu0 %v657
        %v659 = vpop.xlane.xlu0 %658
        %v660 = vrcp.pop 32.0
        %v661 = vmul.f32 %v656, %v660
        %v662 = vmul.f32 %v659, %v660
        %v663 = vsub.f32 %v649, %v661
        %v664 = vsub.f32 %v650, %v662
        %v665 = vmul.f32 %v663, %v663
        %v666 = vmul.f32 %v664, %v664
        %v667 = vsel %vm653, %v665, 0.0
        %668 = vadd.xlane.f32.xlu0 %v667
        %v669 = vpop.xlane.xlu0 %668
        %v670 = vsel %vm653, %v666, 0.0
        %671 = vadd.xlane.f32.xlu0 %v670
        %v672 = vpop.xlane.xlu0 %671
        %v673 = vmul.f32 %v669, %v660
        %v674 = vmul.f32 %v672, %v660
        %v675 = vadd.f32 %v673, 1e-05
        %v676 = vadd.f32 %v674, 1e-05
        %v677 = vrsqrt.pop %v675
        %v678 = vrsqrt.pop %v676
        %v679 = vmul.f32 %v663, %v677
        %v680 = vmul.f32 %v664, %v678
        %v682 = vlaneseq
        %v683 = vshrl.u32 %v682, 7
        %v684 = vsub.s32 0, %v683
        %v685 = vrot.slane %v651, %v684
        %v687 = vmul.f32 %v679, %v685
        %v688 = vmul.f32 %v680, %v685
        %v690 = vlaneseq
        %v691 = vshrl.u32 %v690, 7
        %v692 = vsub.s32 0, %v691
        %v693 = vrot.slane %v652, %v692
        %v695 = vadd.f32 %v687, %v693
        %v696 = vadd.f32 %v688, %v693
        %v697 = vmul.f32 %v695, 0.5
        %v698 = vmul.f32 %v696, 0.5
        %v699 = vmul.f32 %v695, 0.70710677
        %v700 = vmul.f32 %v696, 0.70710677
        %v701 = verf.f32.pop %v699
        %v702 = verf.f32.pop %v700
        %v703 = vadd.f32 %v701, 1.0
        %v704 = vadd.f32 %v702, 1.0
        %v705 = vmul.f32 %v697, %v703
        %v706 = vmul.f32 %v698, %v704
        %v707 = vld [vmem:[#allocation9] sm:$0xff]
        %v708 = vld [vmem:[#allocation9 + $0x8] sm:$0xff]
        %v709 = vld [vmem:[#allocation9 + $0x10] sm:$0xff]
        %v710 = vld [vmem:[#allocation9 + $0x18] sm:$0xff]
        %v711 = vld [vmem:[%s6] sm:$0x1]
        %v713 = vlaneseq
        %v714 = vshrl.u32 %v713, 7
        %v715 = vsub.s32 0, %v714
        %v716 = vrot.slane %v711, %v715
        %v719 = vsel %vm653, %v705, 0
        %v722 = vsel %vm653, %v706, 0
        %724 = vmatprep.subr.mxu0 0.0
        %725 = vmatpush1.msra.mxu0 %v707
        %726 = vmatprep.subr.mxu0 0.0
        %727 = vmatpush1.msra.mxu0 %v708
        %728 = vmatprep.subr.mxu0 0.0
        %729 = vmatpush1.msra.mxu0 %v709
        %730 = vmatprep.subr.mxu0 0.0
        %731 = vmatpush1.msra.mxu0 %v710
        %732 = vmatprep.subr.mxu0 0.0
        %733 = vmatpush1.msra.mxu0 0.0
        %734 = vmatprep.subr.mxu0 0.0
        %735 = vmatpush1.msra.mxu0 0.0
        %736 = vmatprep.subr.mxu0 0.0
        %737 = vmatpush1.msra.mxu0 0.0
        %738 = vmatprep.subr.mxu0 0.0
        %739 = vmatpush1.msra.mxu0 0.0
        %740 = vmatprep.subr.mxu0 0.0
        %741 = vmatpush1.msra.mxu0 0.0
        %742 = vmatprep.subr.mxu0 0.0
        %743 = vmatpush1.msra.mxu0 0.0
        %744 = vmatprep.subr.mxu0 0.0
        %745 = vmatpush1.msra.mxu0 0.0
        %746 = vmatprep.subr.mxu0 0.0
        %747 = vmatpush1.msra.mxu0 0.0
        %748 = vmatprep.subr.mxu0 0.0
        %749 = vmatpush1.msra.mxu0 0.0
        %750 = vmatprep.subr.mxu0 0.0
        %751 = vmatpush1.msra.mxu0 0.0
        %752 = vmatprep.subr.mxu0 0.0
        %753 = vmatpush1.msra.mxu0 0.0
        %754 = vmatprep.subr.mxu0 0.0
        %755 = vmatpush1.msra.mxu0 0.0
        %756 = vmatprep.subr.mxu0 0.0
        %757 = vmatpush1.msra.mxu0 0.0
        %758 = vmatprep.subr.mxu0 0.0
        %759 = vmatpush1.msra.mxu0 0.0
        %760 = vmatprep.subr.mxu0 0.0
        %761 = vmatpush1.msra.mxu0 0.0
        %762 = vmatprep.subr.mxu0 0.0
        %763 = vmatpush1.msra.mxu0 0.0
        %764 = vmatprep.subr.mxu0 0.0
        %765 = vmatpush1.msra.mxu0 0.0
        %766 = vmatprep.subr.mxu0 0.0
        %767 = vmatpush1.msra.mxu0 0.0
        %768 = vmatprep.subr.mxu0 0.0
        %769 = vmatpush1.msra.mxu0 0.0
        %770 = vmatprep.subr.mxu0 0.0
        %771 = vmatpush1.msra.mxu0 0.0
        %772 = vmatprep.subr.mxu0 0.0
        %773 = vmatpush1.msra.mxu0 0.0
        %774 = vmatprep.subr.mxu0 0.0
        %775 = vmatpush1.msra.mxu0 0.0
        %776 = vmatprep.subr.mxu0 0.0
        %777 = vmatpush1.msra.mxu0 0.0
        %778 = vmatprep.subr.mxu0 0.0
        %779 = vmatpush1.msra.mxu0 0.0
        %780 = vmatprep.subr.mxu0 0.0
        %781 = vmatpush1.msra.mxu0 0.0
        %782 = vmatprep.subr.mxu0 0.0
        %783 = vmatpush1.msra.mxu0 0.0
        %784 = vmatprep.subr.mxu0 0.0
        %785 = vmatpush1.msra.mxu0 0.0
        %786 = vmatprep.subr.mxu0 0.0
        %787 = vmatpush1.msra.mxu0 0.0
        %788 = vmatprep.mubr.f32.mxu0 0.0
        %789 = vmatmul.mubr.f32.gmra.mrb[0].mxu0 %v719
        %v790 = vpop.f32.mrb[0].mxu0
        %v791 = vadd.f32 %v716, %v790
        %v792 = vpop.f32.mrb[0].mxu0
        %793 = vmatprep.mubr.f32.mxu0 0.0
        %794 = vmatmul.mubr.f32.gmra.mrb[0].mxu0 %v722
        %v795 = vpop.f32.mrb[0].mxu0
        %v796 = vadd.f32 %v716, %v795
        %v797 = vpop.f32.mrb[0].mxu0
        %798 = vdwg.mxu0
        %v799 = vld [vmem:[%s7] sm:$0x1]
        %v800 = vld [vmem:[%s8] sm:$0x1]
        %v801 = vsel %vm653, %v791, 0.0
        %802 = vadd.xlane.f32.xlu0 %v801
        %v803 = vpop.xlane.xlu0 %802
        %v804 = vsel %vm653, %v796, 0.0
        %805 = vadd.xlane.f32.xlu0 %v804
        %v806 = vpop.xlane.xlu0 %805
        %v807 = vmul.f32 %v803, %v660
        %v808 = vmul.f32 %v806, %v660
        %v809 = vsub.f32 %v791, %v807
        %v810 = vsub.f32 %v796, %v808
        %v811 = vmul.f32 %v809, %v809
        %v812 = vmul.f32 %v810, %v810
        %v813 = vsel %vm653, %v811, 0.0
        %814 = vadd.xlane.f32.xlu0 %v813
        %v815 = vpop.xlane.xlu0 %814
        %v816 = vsel %vm653, %v812, 0.0
        %817 = vadd.xlane.f32.xlu0 %v816
        %v818 = vpop.xlane.xlu0 %817
        %v819 = vmul.f32 %v815, %v660
        %v820 = vmul.f32 %v818, %v660
        %v821 = vadd.f32 %v819, 1e-05
        %v822 = vadd.f32 %v820, 1e-05
        %v823 = vrsqrt.pop %v821
        %v824 = vrsqrt.pop %v822
        %v825 = vmul.f32 %v809, %v823
        %v826 = vmul.f32 %v810, %v824
        %v828 = vlaneseq
        %v829 = vshrl.u32 %v828, 7
        %v830 = vsub.s32 0, %v829
        %v831 = vrot.slane %v799, %v830
        %v833 = vmul.f32 %v825, %v831
        %v834 = vmul.f32 %v826, %v831
        %v836 = vlaneseq
        %v837 = vshrl.u32 %v836, 7
        %v838 = vsub.s32 0, %v837
        %v839 = vrot.slane %v800, %v838
        %v841 = vadd.f32 %v833, %v839
        %v842 = vadd.f32 %v834, %v839
        %v843 = vmul.f32 %v841, 0.5
        %v844 = vmul.f32 %v842, 0.5
        %v845 = vmul.f32 %v841, 0.70710677
        %v846 = vmul.f32 %v842, 0.70710677
        %v847 = verf.f32.pop %v845
        %v848 = verf.f32.pop %v846
        %v849 = vadd.f32 %v847, 1.0
        %v850 = vadd.f32 %v848, 1.0
        %v851 = vmul.f32 %v843, %v849
        %v852 = vmul.f32 %v844, %v850
        %v853 = vld [vmem:[%s9] sm:$0x1]
        %s854 = sld [smem:[#allocation11]]
        %v855 = vstv %s854
        %v857 = vsel %vm653, %v853, 0
        %v860 = vsel %vm653, %v851, 0
        %862 = vmatprep.subr.mxu0 0.0
        %863 = vmatpush1.xpose.msra.mxu0 %v860
        %864 = vmatprep.subr.mxu0 0.0
        %865 = vmatpush1.xpose.msra.mxu0 0.0
        %866 = vmatprep.subr.mxu0 0.0
        %867 = vmatpush1.xpose.msra.mxu0 0.0
        %868 = vmatprep.subr.mxu0 0.0
        %869 = vmatpush1.xpose.msra.mxu0 0.0
        %870 = vmatprep.subr.mxu0 0.0
        %871 = vmatpush1.xpose.msra.mxu0 0.0
        %872 = vmatprep.subr.mxu0 0.0
        %873 = vmatpush1.xpose.msra.mxu0 0.0
        %874 = vmatprep.subr.mxu0 0.0
        %875 = vmatpush1.xpose.msra.mxu0 0.0
        %876 = vmatprep.subr.mxu0 0.0
        %877 = vmatpush1.xpose.msra.mxu0 0.0
        %878 = vmatprep.subr.mxu0 0.0
        %879 = vmatpush1.xpose.msra.mxu0 0.0
        %880 = vmatprep.subr.mxu0 0.0
        %881 = vmatpush1.xpose.msra.mxu0 0.0
        %882 = vmatprep.subr.mxu0 0.0
        %883 = vmatpush1.xpose.msra.mxu0 0.0
        %884 = vmatprep.subr.mxu0 0.0
        %885 = vmatpush1.xpose.msra.mxu0 0.0
        %886 = vmatprep.subr.mxu0 0.0
        %887 = vmatpush1.xpose.msra.mxu0 0.0
        %888 = vmatprep.subr.mxu0 0.0
        %889 = vmatpush1.xpose.msra.mxu0 0.0
        %890 = vmatprep.subr.mxu0 0.0
        %891 = vmatpush1.xpose.msra.mxu0 0.0
        %892 = vmatprep.subr.mxu0 0.0
        %893 = vmatpush1.xpose.msra.mxu0 0.0
        %894 = vmatprep.subr.mxu0 0.0
        %895 = vmatpush1.xpose.msra.mxu0 0.0
        %896 = vmatprep.subr.mxu0 0.0
        %897 = vmatpush1.xpose.msra.mxu0 0.0
        %898 = vmatprep.subr.mxu0 0.0
        %899 = vmatpush1.xpose.msra.mxu0 0.0
        %900 = vmatprep.subr.mxu0 0.0
        %901 = vmatpush1.xpose.msra.mxu0 0.0
        %902 = vmatprep.subr.mxu0 0.0
        %903 = vmatpush1.xpose.msra.mxu0 0.0
        %904 = vmatprep.subr.mxu0 0.0
        %905 = vmatpush1.xpose.msra.mxu0 0.0
        %906 = vmatprep.subr.mxu0 0.0
        %907 = vmatpush1.xpose.msra.mxu0 0.0
        %908 = vmatprep.subr.mxu0 0.0
        %909 = vmatpush1.xpose.msra.mxu0 0.0
        %910 = vmatprep.subr.mxu0 0.0
        %911 = vmatpush1.xpose.msra.mxu0 0.0
        %912 = vmatprep.subr.mxu0 0.0
        %913 = vmatpush1.xpose.msra.mxu0 0.0
        %914 = vmatprep.subr.mxu0 0.0
        %915 = vmatpush1.xpose.msra.mxu0 0.0
        %916 = vmatprep.subr.mxu0 0.0
        %917 = vmatpush1.xpose.msra.mxu0 0.0
        %918 = vmatprep.subr.mxu0 0.0
        %919 = vmatpush1.xpose.msra.mxu0 0.0
        %920 = vmatprep.subr.mxu0 0.0
        %921 = vmatpush1.xpose.msra.mxu0 0.0
        %922 = vmatprep.subr.mxu0 0.0
        %923 = vmatpush1.xpose.msra.mxu0 0.0
        %924 = vmatprep.subr.mxu0 0.0
        %925 = vmatpush1.xpose.msra.mxu0 0.0
        %926 = vmatprep.mubr.f32.mxu0 0.0
        %927 = vmatmul.mubr.f32.gmra.mrb[0].mxu0 %v857
        %v928 = vpop.f32.mrb[0].mxu0
        %v929 = vadd.f32 %v855, %v928
        %v930 = vpop.f32.mrb[0].mxu0
        %931 = vdwg.mxu0
        %v933 = vsel %vm653, %v852, 0
        %935 = vmatprep.subr.mxu0 0.0
        %936 = vmatpush1.xpose.msra.mxu0 %v933
        %937 = vmatprep.subr.mxu0 0.0
        %938 = vmatpush1.xpose.msra.mxu0 0.0
        %939 = vmatprep.subr.mxu0 0.0
        %940 = vmatpush1.xpose.msra.mxu0 0.0
        %941 = vmatprep.subr.mxu0 0.0
        %942 = vmatpush1.xpose.msra.mxu0 0.0
        %943 = vmatprep.subr.mxu0 0.0
        %944 = vmatpush1.xpose.msra.mxu0 0.0
        %945 = vmatprep.subr.mxu0 0.0
        %946 = vmatpush1.xpose.msra.mxu0 0.0
        %947 = vmatprep.subr.mxu0 0.0
        %948 = vmatpush1.xpose.msra.mxu0 0.0
        %949 = vmatprep.subr.mxu0 0.0
        %950 = vmatpush1.xpose.msra.mxu0 0.0
        %951 = vmatprep.subr.mxu0 0.0
        %952 = vmatpush1.xpose.msra.mxu0 0.0
        %953 = vmatprep.subr.mxu0 0.0
        %954 = vmatpush1.xpose.msra.mxu0 0.0
        %955 = vmatprep.subr.mxu0 0.0
        %956 = vmatpush1.xpose.msra.mxu0 0.0
        %957 = vmatprep.subr.mxu0 0.0
        %958 = vmatpush1.xpose.msra.mxu0 0.0
        %959 = vmatprep.subr.mxu0 0.0
        %960 = vmatpush1.xpose.msra.mxu0 0.0
        %961 = vmatprep.subr.mxu0 0.0
        %962 = vmatpush1.xpose.msra.mxu0 0.0
        %963 = vmatprep.subr.mxu0 0.0
        %964 = vmatpush1.xpose.msra.mxu0 0.0
        %965 = vmatprep.subr.mxu0 0.0
        %966 = vmatpush1.xpose.msra.mxu0 0.0
        %967 = vmatprep.subr.mxu0 0.0
        %968 = vmatpush1.xpose.msra.mxu0 0.0
        %969 = vmatprep.subr.mxu0 0.0
        %970 = vmatpush1.xpose.msra.mxu0 0.0
        %971 = vmatprep.subr.mxu0 0.0
        %972 = vmatpush1.xpose.msra.mxu0 0.0
        %973 = vmatprep.subr.mxu0 0.0
        %974 = vmatpush1.xpose.msra.mxu0 0.0
        %975 = vmatprep.subr.mxu0 0.0
        %976 = vmatpush1.xpose.msra.mxu0 0.0
        %977 = vmatprep.subr.mxu0 0.0
        %978 = vmatpush1.xpose.msra.mxu0 0.0
        %979 = vmatprep.subr.mxu0 0.0
        %980 = vmatpush1.xpose.msra.mxu0 0.0
        %981 = vmatprep.subr.mxu0 0.0
        %982 = vmatpush1.xpose.msra.mxu0 0.0
        %983 = vmatprep.subr.mxu0 0.0
        %984 = vmatpush1.xpose.msra.mxu0 0.0
        %985 = vmatprep.subr.mxu0 0.0
        %986 = vmatpush1.xpose.msra.mxu0 0.0
        %987 = vmatprep.subr.mxu0 0.0
        %988 = vmatpush1.xpose.msra.mxu0 0.0
        %989 = vmatprep.subr.mxu0 0.0
        %990 = vmatpush1.xpose.msra.mxu0 0.0
        %991 = vmatprep.subr.mxu0 0.0
        %992 = vmatpush1.xpose.msra.mxu0 0.0
        %993 = vmatprep.subr.mxu0 0.0
        %994 = vmatpush1.xpose.msra.mxu0 0.0
        %995 = vmatprep.subr.mxu0 0.0
        %996 = vmatpush1.xpose.msra.mxu0 0.0
        %997 = vmatprep.subr.mxu0 0.0
        %998 = vmatpush1.xpose.msra.mxu0 0.0
        %999 = vmatprep.mubr.f32.mxu0 0.0
        %1000 = vmatmul.mubr.f32.gmra.mrb[0].mxu0 %v857
        %v1001 = vpop.f32.mrb[0].mxu0
        %v1002 = vadd.f32 %v855, %v1001
        %v1003 = vpop.f32.mrb[0].mxu0
        %1004 = vdwg.mxu0
        %s1005 = sld [smem:[#allocation11 + $0x1]]
        %v1006 = vstv %s1005
        %v1007 = vsub.f32 %v929, %v1006
        %v1008 = vsub.f32 %v1002, %v1006
        %v1009 = vmul.f32 %v1007, 10.0
        %v1010 = vmul.f32 %v1008, 10.0
        %v1011 = vxor.u32 %v1009, 2147483648
        %v1012 = vxor.u32 %v1010, 2147483648
        %v1013 = vmul.f32 %v1011, 1.442695
        %v1014 = vpow.pop %v1013
        %v1015 = vmul.f32 %v1012, 1.442695
        %v1016 = vpow.pop %v1015
        %v1017 = vadd.f32 %v1014, 1.0
        %v1018 = vadd.f32 %v1016, 1.0
        %v1019 = vrcp.pop %v1017
        %v1020 = vmul.f32 1.0, %v1019
        %v1021 = vrcp.pop %v1018
        %v1022 = vmul.f32 1.0, %v1021
        %v1023 = vmax.f32 %v1020, 1e-05
        %v1024 = vmax.f32 %v1022, 1e-05
        %v1025 = vmin.f32 %v1023, 1.0
        %v1026 = vmin.f32 %v1024, 1.0
        %vm1027 = vcmask 57344
        %1028 = vst.msk [vmem:[%s537] sm:$0x1] %vm1027, %v929
        %1029 = vst.msk [vmem:[%s537 + $0x1] sm:$0x1] %vm1027, %v1002
        %1030 = vst.msk [vmem:[%s544] sm:$0x1] %vm1027, %v1025
        %1031 = vst.msk [vmem:[%s544 + $0x1] sm:$0x1] %vm1027, %v1026
        %s1032 = sand.u32 %s303, 1
        %s1033 = scalar_lea.sflag [#allocation4], %s1032
        %s1034 = sand.u32 %s303, 1
        %s1035 = smul.addr %s1034, 2
        %s1036 = scalar_lea.vmem [#allocation12], %s1035
        %s1037 = sand.u32 %s331, 1
        %s1038 = scalar_lea.sflag [#allocation14], %s1037
        %s1039 = sand.u32 %s331, 1
        %s1040 = smul.addr %s1039, 2
        %s1041 = scalar_lea.vmem [#allocation13], %s1040
        // Predicated region
        $region85: #{tpu_custom_call.1} parent=63 // pred_check
          %p1042 = pneg %p313
        $region86: #{tpu_custom_call.1} parent=63 // pred_check_branch
          %1044 = sbr.rel (%p1042) target = $region88
        $region87: #{tpu_custom_call.1} parent=63 // pred_region
          %s1045 = smul.u32 2, %s42
          %s1047 = ssub.s32 32, 32
          %1048 = vsyncadd %s1033, %s1047
          %s1049 = sadd.s32 %s43, %s1045
          %s1050 = smul.addr %s1049, 16
          %s1051 = scalar_lea.hbm %s11, %s1050
          %s1052 = sshll.u32 %s1036, 4
          %s1053 = int_to_ptr.vmem [resolvable:$true] %s1052
          %1058 = dma.vmem_to_hbm [thread:$0]  %s1053, 32, %s1051, %s1033, 16, 16, 1
        $region88: #{tpu_custom_call.1} parent=63 // pred_fallthru
          _
        // Predicated region
        $region89: #{tpu_custom_call.1} parent=63 // pred_check
          %p1059 = pneg %p341
        $region90: #{tpu_custom_call.1} parent=63 // pred_check_branch
          %1061 = sbr.rel (%p1059) target = $region92
        $region91: #{tpu_custom_call.1} parent=63 // pred_region
          %s1062 = smul.u32 2, %s42
          %s1064 = ssub.s32 32, 32
          %1065 = vsyncadd %s1038, %s1064
          %s1066 = sadd.s32 %s43, %s1062
          %s1067 = smul.addr %s1066, 16
          %s1068 = scalar_lea.hbm %s12, %s1067
          %s1069 = sshll.u32 %s1041, 4
          %s1070 = int_to_ptr.vmem [resolvable:$true] %s1069
          %1075 = dma.vmem_to_hbm [thread:$0]  %s1070, 32, %s1068, %s1038, 16, 16, 1
        $region92: #{tpu_custom_call.1} parent=63 // pred_fallthru
          _
      $region64: #{tpu_custom_call.1} parent=5 // pred_fallthru
        _
      %p1076 = scmp.le.s32.totalorder 2, %s33
      // Predicated region
      $region93: #{tpu_custom_call.1} parent=5 // pred_check
        %p1077 = pneg %p1076
      $region94: #{tpu_custom_call.1} parent=5 // pred_check_branch
        %1079 = sbr.rel (%p1077) target = $region96
      $region95: #{tpu_custom_call.1} parent=5 // pred_region
        %s1080 = ssub.s32 %s33, 2
        // Predicated region
        $region97: #{tpu_custom_call.1} parent=95 // pred_check
          %p1081 = pneg %p319
        $region98: #{tpu_custom_call.1} parent=95 // pred_check_branch
          %1083 = sbr.rel (%p1081) target = $region100
        $region99: #{tpu_custom_call.1} parent=95 // pred_region
          %s1084 = sand.u32 %s304, 1
          %s1085 = scalar_lea.sflag [#allocation4], %s1084
          %s1086 = sand.u32 %s304, 1
          %s1087 = smul.addr %s1086, 2
          %s1088 = scalar_lea.vmem [#allocation12], %s1087
          %1089 = dma.done %s1085, 32
        $region100: #{tpu_custom_call.1} parent=95 // pred_fallthru
          _
        // Predicated region
        $region101: #{tpu_custom_call.1} parent=95 // pred_check
          %p1090 = pneg %p347
        $region102: #{tpu_custom_call.1} parent=95 // pred_check_branch
          %1092 = sbr.rel (%p1090) target = $region104
        $region103: #{tpu_custom_call.1} parent=95 // pred_region
          %s1093 = sand.u32 %s332, 1
          %s1094 = scalar_lea.sflag [#allocation14], %s1093
          %s1095 = sand.u32 %s332, 1
          %s1096 = smul.addr %s1095, 2
          %s1097 = scalar_lea.vmem [#allocation13], %s1096
          %1098 = dma.done %s1094, 32
        $region104: #{tpu_custom_call.1} parent=95 // pred_fallthru
          _
      $region96: #{tpu_custom_call.1} parent=5 // pred_fallthru
        _
    $region6: #{tpu_custom_call.1} parent=1 // loop_footer
      %s37 = sadd.s32 1, %s33
    $region7: #{tpu_custom_call.1} parent=1 // loop_footer_branch
      %32 = sbr.rel target = $region3
    $region8: #{tpu_custom_call.1} parent=1 // loop_exit
      _
    %1099 = vsyncpa [#allocation3], 1
    %s1100 = scalar_lea.sflag [#allocation3], 1
    %1101 = vsyncpa %s1100, 1
    %1102 = vsyncpa [#allocation7], 1
    %s1103 = scalar_lea.sflag [#allocation7], 1
    %1104 = vsyncpa %s1103, 1
    %1105 = vsyncpa [#allocation10], 1
    %1106 = vsyncpa [#allocation4], 1
    %s1107 = scalar_lea.sflag [#allocation4], 1
    %1108 = vsyncpa %s1107, 1
    %1109 = vsyncpa [#allocation14], 1
    %s1110 = scalar_lea.sflag [#allocation14], 1
    %1111 = vsyncpa %s1110, 1
    %1112 = vsyncpa [#allocation5], 1
    %s1113 = scalar_lea.sflag [#allocation5], 1
    %1114 = vsyncpa %s1113, 1

// kernel: tpu_custom_call.1
$region0: #{tpu_custom_call.1}
  #allocation0 [shape = 'u32[]', space=smem, size = 0x4, offset = 0x4, fixed_abs, tag = 'smem constant byte address 0x4 - core index']
  #allocation1 [shape = 'u32[144,128]{1,0:T(1,128)}', space=vmem, size = 0x12000, scoped, tag = 'internal scratch']
  %s0 = inlined_call_operand.hbm [shape: f32[4,8,16], index: 0, kind: input, shape index: {}]
  %s1 = inlined_call_operand.hbm [shape: f32[4,1,32], index: 1, kind: input, shape index: {}]
  %s2 = inlined_call_operand.hbm [shape: f32[16,32], index: 2, kind: input, shape index: {}]
  %s3 = inlined_call_operand.vmem [shape: f32[1,32], index: 3, kind: input, shape index: {}]
  %s4 = inlined_call_operand.vmem [shape: f32[1,32], index: 4, kind: input, shape index: {}]
  %s5 = inlined_call_operand.hbm [shape: f32[32,32], index: 5, kind: input, shape index: {}]
  %s6 = inlined_call_operand.vmem [shape: f32[1,32], index: 6, kind: input, shape index: {}]
  %s7 = inlined_call_operand.vmem [shape: f32[1,32], index: 7, kind: input, shape index: {}]
  %s8 = inlined_call_operand.vmem [shape: f32[1,32], index: 8, kind: input, shape index: {}]
  %s9 = inlined_call_operand.vmem [shape: f32[1,32], index: 9, kind: input, shape index: {}]
  %s10 = inlined_call_operand.vmem [shape: f32[2], index: 10, kind: input, shape index: {}]
  %s11 = inlined_call_operand.hbm [shape: f32[4,1,8], index: 11, kind: output, shape index: {0}]
  %s12 = inlined_call_operand.hbm [shape: f32[4,1,8], index: 12, kind: output, shape index: {1}]
  %13 = xla_tuple %s11, %s12
  %s14 = sld [smem:[#allocation0]]
  $region105: #{tpu_custom_call.1} parent=0
    _
  %s16 = ssub.s32 1, %s14
  %s17 = scalar_select 0, %s16, %s14
  $region1: #{tpu_custom_call.1} parent=0
    #allocation2 [shape = 'u8[16384]{0}', space=vmem, size = 0x4000, scoped, tag = 'input window, operand 0']
    #allocation3 [shape = 's32[2]{0}', space=sflag, size = 0x8, scoped, tag = 'scoped memory for tpu_custom_call.1']
    #allocation4 [shape = 's32[2]{0}', space=sflag, size = 0x8, scoped, tag = 'scoped memory for tpu_custom_call.1']
    #allocation5 [shape = 's32[2]{0}', space=sflag, size = 0x8, scoped, tag = 'scoped memory for tpu_custom_call.1']
    #allocation6 [shape = 'u8[2048]{0}', space=vmem, size = 0x800, scoped, tag = 'input window, operand 1']
    #allocation7 [shape = 's32[2]{0}', space=sflag, size = 0x8, scoped, tag = 'scoped memory for tpu_custom_call.1']
    #allocation8 [shape = 'u8[8192]{0}', space=vmem, size = 0x2000, scoped, tag = 'input window, operand 2, single buffered']
    #allocation9 [shape = 'u8[16384]{0}', space=vmem, size = 0x4000, scoped, tag = 'input window, operand 5, single buffered']
    #allocation10 [shape = 's32[1]{0}', space=sflag, size = 0x4, scoped, tag = 'scoped memory for tpu_custom_call.1']
    #allocation11 [shape = 'u8[512]{0}', space=smem, size = 0x200, scoped, tag = 'input window, operand 10, single buffered']
    #allocation12 [shape = 'u8[2048]{0}', space=vmem, size = 0x800, scoped, tag = 'output window, operand 0']
    #allocation13 [shape = 'u8[2048]{0}', space=vmem, size = 0x800, scoped, tag = 'output window, operand 1']
    #allocation14 [shape = 's32[2]{0}', space=sflag, size = 0x8, scoped, tag = 'scoped memory for tpu_custom_call.1']
    %18 = vsyncpa [#allocation3], 0
    %s19 = scalar_lea.sflag [#allocation3], 1
    %20 = vsyncpa %s19, 0
    %21 = vsyncpa [#allocation7], 0
    %s22 = scalar_lea.sflag [#allocation7], 1
    %23 = vsyncpa %s22, 0
    %24 = vsyncpa [#allocation10], 0
    %25 = vsyncpa [#allocation5], 0
    %26 = vsyncpa [#allocation4], 0
    %s27 = scalar_lea.sflag [#allocation4], 1
    %28 = vsyncpa %s27, 0
    %29 = vsyncpa [#allocation14], 0
    %s30 = scalar_lea.sflag [#allocation14], 1
    %31 = vsyncpa %s30, 0
    loop: start=0, step=1, limit=4
    $region2: #{tpu_custom_call.1} parent=1 // loop_pre_header
      _
    $region3: #{tpu_custom_call.1} parent=1 // loop_header
      %s33 = sphi 0, %s37
      %p34 = scmp.ge.s32.totalorder %s33, 4
      %s40 = sphi 0, %s52
      %s41 = sphi 0, %s48
      %s42 = sphi 0, %s40
      %s43 = sphi 0, %s41
      %s44 = sphi 0, %s42
      %s45 = sphi 0, %s43
      %s57 = sphi 0, %s59
      %s60 = sphi 0, %s57
      %s61 = sphi 0, %s60
      %s77 = sphi 0, %s61
      %s83 = sphi 0, %s85
      %s86 = sphi 0, %s83
      %s87 = sphi 0, %s86
      %s103 = sphi 0, %s87
      %s107 = sphi 0, %s107
      %s109 = sphi 0, %s107
      %s110 = sphi 0, %s109
      %s124 = sphi 0, %s110
      %s128 = sphi 0, %s128
      %s130 = sphi 0, %s128
      %s131 = sphi 0, %s130
      %s145 = sphi 0, %s131
      %s149 = sphi 0, %s149
      %s151 = sphi 0, %s149
      %s152 = sphi 0, %s151
      %s166 = sphi 0, %s152
      %s170 = sphi 0, %s170
      %s172 = sphi 0, %s170
      %s173 = sphi 0, %s172
      %s187 = sphi 0, %s173
      %s191 = sphi 0, %s191
      %s193 = sphi 0, %s191
      %s194 = sphi 0, %s193
      %s208 = sphi 0, %s194
      %s212 = sphi 0, %s212
      %s214 = sphi 0, %s212
      %s215 = sphi 0, %s214
      %s229 = sphi 0, %s215
      %s233 = sphi 0, %s233
      %s235 = sphi 0, %s233
      %s236 = sphi 0, %s235
      %s250 = sphi 0, %s236
      %s254 = sphi 0, %s254
      %s256 = sphi 0, %s254
      %s257 = sphi 0, %s256
      %s271 = sphi 0, %s257
      %s275 = sphi 0, %s275
      %s277 = sphi 0, %s275
      %s278 = sphi 0, %s277
      %s292 = sphi 0, %s278
      %s300 = sphi 0, %s302
      %s303 = sphi 0, %s300
      %s304 = sphi 0, %s303
      %s320 = sphi 0, %s304
      %s328 = sphi 0, %s330
      %s331 = sphi 0, %s328
      %s332 = sphi 0, %s331
      %s348 = sphi 0, %s332
    $region4: #{tpu_custom_call.1} parent=1 // loop_header_branch
      %36 = sbr.rel (%p34) target = $region8
    $region5: #{tpu_custom_call.1} parent=1 // loop_body
      %s38 = ssub.s32 %s33, 1
      %s39 = ssub.s32 %s33, 2
      %s46 = sadd.s32 1, %s41
      %p47 = scmp.ge.s32.totalorder %s46, 1
      %s48 = scalar_select %p47, 0, %s46
      %s49 = sadd.s32 1, %s40
      %s50 = scalar_select %p47, %s49, %s40
      %p51 = scmp.ge.s32.totalorder %s50, 2
      %s52 = scalar_select %p51, 0, %s50
      %s53 = ssub.s32 %s40, %s52
      %s54 = ssub.s32 %s41, %s48
      %s55 = sor.u32 %s53, %s54
      %p56 = scmp.eq.s32.totalorder %s55, 0
      %s58 = sadd.s32 %s57, 1
      %s59 = scalar_select %p56, %s57, %s58
      %p62 = pneg %p56
      %p63 = scmp.eq.s32.totalorder %s33, 1
      %p64 = por %p62, %p63
      %p65 = scmp.ne.s32.totalorder %s57, %s60
      %p66 = scmp.eq.s32.totalorder %s33, 0
      %p67 = por %p65, %p66
      %p68 = scmp.ne.s32.totalorder %s57, %s60
      %p69 = scmp.eq.s32.totalorder %s38, 1
      %p70 = por %p68, %p69
      %p71 = scmp.ne.s32.totalorder %s60, %s61
      %p72 = scmp.eq.s32.totalorder %s38, 0
      %p73 = por %p71, %p72
      %p74 = scmp.ne.s32.totalorder %s60, %s61
      %p75 = scmp.eq.s32.totalorder %s39, 1
      %p76 = por %p74, %p75
      %p78 = scmp.ne.s32.totalorder %s61, %s77
      %p79 = scmp.eq.s32.totalorder %s39, 0
      %p80 = por %p78, %p79
      %s81 = ssub.s32 %s40, %s52
      %p82 = scmp.eq.s32.totalorder %s81, 0
      %s84 = sadd.s32 %s83, 1
      %s85 = scalar_select %p82, %s83, %s84
      %p88 = pneg %p82
      %p89 = scmp.eq.s32.totalorder %s33, 1
      %p90 = por %p88, %p89
      %p91 = scmp.ne.s32.totalorder %s83, %s86
      %p92 = scmp.eq.s32.totalorder %s33, 0
      %p93 = por %p91, %p92
      %p94 = scmp.ne.s32.totalorder %s83, %s86
      %p95 = scmp.eq.s32.totalorder %s38, 1
      %p96 = por %p94, %p95
      %p97 = scmp.ne.s32.totalorder %s86, %s87
      %p98 = scmp.eq.s32.totalorder %s38, 0
      %p99 = por %p97, %p98
      %p100 = scmp.ne.s32.totalorder %s86, %s87
      %p101 = scmp.eq.s32.totalorder %s39, 1
      %p102 = por %p100, %p101
      %p104 = scmp.ne.s32.totalorder %s87, %s103
      %p105 = scmp.eq.s32.totalorder %s39, 0
      %p106 = por %p104, %p105
      %s108 = sadd.s32 %s107, 1
      %p111 = scmp.eq.s32.totalorder %s33, 1
      %p112 = scmp.ne.s32.totalorder %s107, %s109
      %p113 = scmp.eq.s32.totalorder %s33, 0
      %p114 = por %p112, %p113
      %p115 = scmp.ne.s32.totalorder %s107, %s109
      %p116 = scmp.eq.s32.totalorder %s38, 1
      %p117 = por %p115, %p116
      %p118 = scmp.ne.s32.totalorder %s109, %s110
      %p119 = scmp.eq.s32.totalorder %s38, 0
      %p120 = por %p118, %p119
      %p121 = scmp.ne.s32.totalorder %s109, %s110
      %p122 = scmp.eq.s32.totalorder %s39, 1
      %p123 = por %p121, %p122
      %p125 = scmp.ne.s32.totalorder %s110, %s124
      %p126 = scmp.eq.s32.totalorder %s39, 0
      %p127 = por %p125, %p126
      %s129 = sadd.s32 %s128, 1
      %p132 = scmp.eq.s32.totalorder %s33, 1
      %p133 = scmp.ne.s32.totalorder %s128, %s130
      %p134 = scmp.eq.s32.totalorder %s33, 0
      %p135 = por %p133, %p134
      %p136 = scmp.ne.s32.totalorder %s128, %s130
      %p137 = scmp.eq.s32.totalorder %s38, 1
      %p138 = por %p136, %p137
      %p139 = scmp.ne.s32.totalorder %s130, %s131
      %p140 = scmp.eq.s32.totalorder %s38, 0
      %p141 = por %p139, %p140
      %p142 = scmp.ne.s32.totalorder %s130, %s131
      %p143 = scmp.eq.s32.totalorder %s39, 1
      %p144 = por %p142, %p143
      %p146 = scmp.ne.s32.totalorder %s131, %s145
      %p147 = scmp.eq.s32.totalorder %s39, 0
      %p148 = por %p146, %p147
      %s150 = sadd.s32 %s149, 1
      %p153 = scmp.eq.s32.totalorder %s33, 1
      %p154 = scmp.ne.s32.totalorder %s149, %s151
      %p155 = scmp.eq.s32.totalorder %s33, 0
      %p156 = por %p154, %p155
      %p157 = scmp.ne.s32.totalorder %s149, %s151
      %p158 = scmp.eq.s32.totalorder %s38, 1
      %p159 = por %p157, %p158
      %p160 = scmp.ne.s32.totalorder %s151, %s152
      %p161 = scmp.eq.s32.totalorder %s38, 0
      %p162 = por %p160, %p161
      %p163 = scmp.ne.s32.totalorder %s151, %s152
      %p164 = scmp.eq.s32.totalorder %s39, 1
      %p165 = por %p163, %p164
      %p167 = scmp.ne.s32.totalorder %s152, %s166
      %p168 = scmp.eq.s32.totalorder %s39, 0
      %p169 = por %p167, %p168
      %s171 = sadd.s32 %s170, 1
      %p174 = scmp.eq.s32.totalorder %s33, 1
      %p175 = scmp.ne.s32.totalorder %s170, %s172
      %p176 = scmp.eq.s32.totalorder %s33, 0
      %p177 = por %p175, %p176
      %p178 = scmp.ne.s32.totalorder %s170, %s172
      %p179 = scmp.eq.s32.totalorder %s38, 1
      %p180 = por %p178, %p179
      %p181 = scmp.ne.s32.totalorder %s172, %s173
      %p182 = scmp.eq.s32.totalorder %s38, 0
      %p183 = por %p181, %p182
      %p184 = scmp.ne.s32.totalorder %s172, %s173
      %p185 = scmp.eq.s32.totalorder %s39, 1
      %p186 = por %p184, %p185
      %p188 = scmp.ne.s32.totalorder %s173, %s187
      %p189 = scmp.eq.s32.totalorder %s39, 0
      %p190 = por %p188, %p189
      %s192 = sadd.s32 %s191, 1
      %p195 = scmp.eq.s32.totalorder %s33, 1
      %p196 = scmp.ne.s32.totalorder %s191, %s193
      %p197 = scmp.eq.s32.totalorder %s33, 0
      %p198 = por %p196, %p197
      %p199 = scmp.ne.s32.totalorder %s191, %s193
      %p200 = scmp.eq.s32.totalorder %s38, 1
      %p201 = por %p199, %p200
      %p202 = scmp.ne.s32.totalorder %s193, %s194
      %p203 = scmp.eq.s32.totalorder %s38, 0
      %p204 = por %p202, %p203
      %p205 = scmp.ne.s32.totalorder %s193, %s194
      %p206 = scmp.eq.s32.totalorder %s39, 1
      %p207 = por %p205, %p206
      %p209 = scmp.ne.s32.totalorder %s194, %s208
      %p210 = scmp.eq.s32.totalorder %s39, 0
      %p211 = por %p209, %p210
      %s213 = sadd.s32 %s212, 1
      %p216 = scmp.eq.s32.totalorder %s33, 1
      %p217 = scmp.ne.s32.totalorder %s212, %s214
      %p218 = scmp.eq.s32.totalorder %s33, 0
      %p219 = por %p217, %p218
      %p220 = scmp.ne.s32.totalorder %s212, %s214
      %p221 = scmp.eq.s32.totalorder %s38, 1
      %p222 = por %p220, %p221
      %p223 = scmp.ne.s32.totalorder %s214, %s215
      %p224 = scmp.eq.s32.totalorder %s38, 0
      %p225 = por %p223, %p224
      %p226 = scmp.ne.s32.totalorder %s214, %s215
      %p227 = scmp.eq.s32.totalorder %s39, 1
      %p228 = por %p226, %p227
      %p230 = scmp.ne.s32.totalorder %s215, %s229
      %p231 = scmp.eq.s32.totalorder %s39, 0
      %p232 = por %p230, %p231
      %s234 = sadd.s32 %s233, 1
      %p237 = scmp.eq.s32.totalorder %s33, 1
      %p238 = scmp.ne.s32.totalorder %s233, %s235
      %p239 = scmp.eq.s32.totalorder %s33, 0
      %p240 = por %p238, %p239
      %p241 = scmp.ne.s32.totalorder %s233, %s235
      %p242 = scmp.eq.s32.totalorder %s38, 1
      %p243 = por %p241, %p242
      %p244 = scmp.ne.s32.totalorder %s235, %s236
      %p245 = scmp.eq.s32.totalorder %s38, 0
      %p246 = por %p244, %p245
      %p247 = scmp.ne.s32.totalorder %s235, %s236
      %p248 = scmp.eq.s32.totalorder %s39, 1
      %p249 = por %p247, %p248
      %p251 = scmp.ne.s32.totalorder %s236, %s250
      %p252 = scmp.eq.s32.totalorder %s39, 0
      %p253 = por %p251, %p252
      %s255 = sadd.s32 %s254, 1
      %p258 = scmp.eq.s32.totalorder %s33, 1
      %p259 = scmp.ne.s32.totalorder %s254, %s256
      %p260 = scmp.eq.s32.totalorder %s33, 0
      %p261 = por %p259, %p260
      %p262 = scmp.ne.s32.totalorder %s254, %s256
      %p263 = scmp.eq.s32.totalorder %s38, 1
      %p264 = por %p262, %p263
      %p265 = scmp.ne.s32.totalorder %s256, %s257
      %p266 = scmp.eq.s32.totalorder %s38, 0
      %p267 = por %p265, %p266
      %p268 = scmp.ne.s32.totalorder %s256, %s257
      %p269 = scmp.eq.s32.totalorder %s39, 1
      %p270 = por %p268, %p269
      %p272 = scmp.ne.s32.totalorder %s257, %s271
      %p273 = scmp.eq.s32.totalorder %s39, 0
      %p274 = por %p272, %p273
      %s276 = sadd.s32 %s275, 1
      %p279 = scmp.eq.s32.totalorder %s33, 1
      %p280 = scmp.ne.s32.totalorder %s275, %s277
      %p281 = scmp.eq.s32.totalorder %s33, 0
      %p282 = por %p280, %p281
      %p283 = scmp.ne.s32.totalorder %s275, %s277
      %p284 = scmp.eq.s32.totalorder %s38, 1
      %p285 = por %p283, %p284
      %p286 = scmp.ne.s32.totalorder %s277, %s278
      %p287 = scmp.eq.s32.totalorder %s38, 0
      %p288 = por %p286, %p287
      %p289 = scmp.ne.s32.totalorder %s277, %s278
      %p290 = scmp.eq.s32.totalorder %s39, 1
      %p291 = por %p289, %p290
      %p293 = scmp.ne.s32.totalorder %s278, %s292
      %p294 = scmp.eq.s32.totalorder %s39, 0
      %p295 = por %p293, %p294
      %s296 = ssub.s32 %s40, %s52
      %s297 = ssub.s32 %s41, %s48
      %s298 = sor.u32 %s296, %s297
      %p299 = scmp.eq.s32.totalorder %s298, 0
      %s301 = sadd.s32 %s300, 1
      %s302 = scalar_select %p299, %s300, %s301
      %p305 = pneg %p299
      %p306 = scmp.eq.s32.totalorder %s33, 1
      %p307 = por %p305, %p306
      %p308 = scmp.ne.s32.totalorder %s300, %s303
      %p309 = scmp.eq.s32.totalorder %s33, 0
      %p310 = por %p308, %p309
      %p311 = scmp.ne.s32.totalorder %s300, %s303
      %p312 = scmp.eq.s32.totalorder %s38, 1
      %p313 = por %p311, %p312
      %p314 = scmp.ne.s32.totalorder %s303, %s304
      %p315 = scmp.eq.s32.totalorder %s38, 0
      %p316 = por %p314, %p315
      %p317 = scmp.ne.s32.totalorder %s303, %s304
      %p318 = scmp.eq.s32.totalorder %s39, 1
      %p319 = por %p317, %p318
      %p321 = scmp.ne.s32.totalorder %s304, %s320
      %p322 = scmp.eq.s32.totalorder %s39, 0
      %p323 = por %p321, %p322
      %s324 = ssub.s32 %s40, %s52
      %s325 = ssub.s32 %s41, %s48
      %s326 = sor.u32 %s324, %s325
      %p327 = scmp.eq.s32.totalorder %s326, 0
      %s329 = sadd.s32 %s328, 1
      %s330 = scalar_select %p327, %s328, %s329
      %p333 = pneg %p327
      %p334 = scmp.eq.s32.totalorder %s33, 1
      %p335 = por %p333, %p334
      %p336 = scmp.ne.s32.totalorder %s328, %s331
      %p337 = scmp.eq.s32.totalorder %s33, 0
      %p338 = por %p336, %p337
      %p339 = scmp.ne.s32.totalorder %s328, %s331
      %p340 = scmp.eq.s32.totalorder %s38, 1
      %p341 = por %p339, %p340
      %p342 = scmp.ne.s32.totalorder %s331, %s332
      %p343 = scmp.eq.s32.totalorder %s38, 0
      %p344 = por %p342, %p343
      %p345 = scmp.ne.s32.totalorder %s331, %s332
      %p346 = scmp.eq.s32.totalorder %s39, 1
      %p347 = por %p345, %p346
      %p349 = scmp.ne.s32.totalorder %s332, %s348
      %p350 = scmp.eq.s32.totalorder %s39, 0
      %p351 = por %p349, %p350
      %p352 = scmp.le.s32.totalorder 1, %s33
      %p353 = scmp.lt.s32.totalorder %s33, 3
      %p354 = pnand %p352, %p353
      %p355 = pneg %p354
      // Predicated region
      $region9: #{tpu_custom_call.1} parent=5 // pred_check
        _
      $region10: #{tpu_custom_call.1} parent=5 // pred_check_branch
        %357 = sbr.rel (%p354) target = $region12
      $region11: #{tpu_custom_call.1} parent=5 // pred_region
        %s358 = ssub.s32 %s33, 1
        // Predicated region
        $region13: #{tpu_custom_call.1} parent=11 // pred_check
          %p359 = pneg %p120
        $region14: #{tpu_custom_call.1} parent=11 // pred_check_branch
          %361 = sbr.rel (%p359) target = $region16
        $region15: #{tpu_custom_call.1} parent=11 // pred_region
          %s363 = ssub.s32 256, 256
          %364 = vsyncadd [#allocation7], %s363
          %s365 = sshll.u32 [#allocation8], 4
          %s366 = int_to_ptr.vmem [resolvable:$true] %s365
          %371 = dma.hbm_to_vmem [thread:$0]  %s2, 256, %s366, [#allocation7], 128, 128, 8
        $region16: #{tpu_custom_call.1} parent=11 // pred_fallthru
          _
        // Predicated region
        $region17: #{tpu_custom_call.1} parent=11 // pred_check
          %p372 = pneg %p141
        $region18: #{tpu_custom_call.1} parent=11 // pred_check_branch
          %374 = sbr.rel (%p372) target = $region20
        $region19: #{tpu_custom_call.1} parent=11 // pred_region
          _
        $region20: #{tpu_custom_call.1} parent=11 // pred_fallthru
          _
        // Predicated region
        $region21: #{tpu_custom_call.1} parent=11 // pred_check
          %p375 = pneg %p162
        $region22: #{tpu_custom_call.1} parent=11 // pred_check_branch
          %377 = sbr.rel (%p375) target = $region24
        $region23: #{tpu_custom_call.1} parent=11 // pred_region
          _
        $region24: #{tpu_custom_call.1} parent=11 // pred_fallthru
          _
        // Predicated region
        $region25: #{tpu_custom_call.1} parent=11 // pred_check
          %p378 = pneg %p183
        $region26: #{tpu_custom_call.1} parent=11 // pred_check_branch
          %380 = sbr.rel (%p378) target = $region28
        $region27: #{tpu_custom_call.1} parent=11 // pred_region
          %s382 = ssub.s32 512, 512
          %383 = vsyncadd [#allocation10], %s382
          %s384 = sshll.u32 [#allocation9], 4
          %s385 = int_to_ptr.vmem [resolvable:$true] %s384
          %390 = dma.hbm_to_vmem [thread:$0]  %s5, 512, %s385, [#allocation10], 128, 128, 8
        $region28: #{tpu_custom_call.1} parent=11 // pred_fallthru
          _
        // Predicated region
        $region29: #{tpu_custom_call.1} parent=11 // pred_check
          %p391 = pneg %p204
        $region30: #{tpu_custom_call.1} parent=11 // pred_check_branch
          %393 = sbr.rel (%p391) target = $region32
        $region31: #{tpu_custom_call.1} parent=11 // pred_region
          _
        $region32: #{tpu_custom_call.1} parent=11 // pred_fallthru
          _
        // Predicated region
        $region33: #{tpu_custom_call.1} parent=11 // pred_check
          %p394 = pneg %p225
        $region34: #{tpu_custom_call.1} parent=11 // pred_check_branch
          %396 = sbr.rel (%p394) target = $region36
        $region35: #{tpu_custom_call.1} parent=11 // pred_region
          _
        $region36: #{tpu_custom_call.1} parent=11 // pred_fallthru
          _
        // Predicated region
        $region37: #{tpu_custom_call.1} parent=11 // pred_check
          %p397 = pneg %p246
        $region38: #{tpu_custom_call.1} parent=11 // pred_check_branch
          %399 = sbr.rel (%p397) target = $region40
        $region39: #{tpu_custom_call.1} parent=11 // pred_region
          _
        $region40: #{tpu_custom_call.1} parent=11 // pred_fallthru
          _
        // Predicated region
        $region41: #{tpu_custom_call.1} parent=11 // pred_check
          %p400 = pneg %p267
        $region42: #{tpu_custom_call.1} parent=11 // pred_check_branch
          %402 = sbr.rel (%p400) target = $region44
        $region43: #{tpu_custom_call.1} parent=11 // pred_region
          _
        $region44: #{tpu_custom_call.1} parent=11 // pred_fallthru
          _
        // Predicated region
        $region45: #{tpu_custom_call.1} parent=11 // pred_check
          %p403 = pneg %p288
        $region46: #{tpu_custom_call.1} parent=11 // pred_check_branch
          %405 = sbr.rel (%p403) target = $region48
        $region47: #{tpu_custom_call.1} parent=11 // pred_region
          %s407 = ssub.s32 16, 16
          %408 = vsyncadd [#allocation5], %s407
          %s410 = sshll.u32 %s10, 4
          %s411 = int_to_ptr.vmem [resolvable:$true] %s410
          %413 = dma.vmem_to_smem %s411, 16, [#allocation11], [#allocation5]
        $region48: #{tpu_custom_call.1} parent=11 // pred_fallthru
          _
      $region12: #{tpu_custom_call.1} parent=5 // pred_fallthru
        _
      %p414 = scmp.lt.s32.totalorder %s33, 2
      // Predicated region
      $region49: #{tpu_custom_call.1} parent=5 // pred_check
        %p415 = pneg %p414
      $region50: #{tpu_custom_call.1} parent=5 // pred_check_branch
        %417 = sbr.rel (%p415) target = $region52
      $region51: #{tpu_custom_call.1} parent=5 // pred_region
        // Predicated region
        $region53: #{tpu_custom_call.1} parent=51 // pred_check
          %p418 = pneg %p67
        $region54: #{tpu_custom_call.1} parent=51 // pred_check_branch
          %420 = sbr.rel (%p418) target = $region56
        $region55: #{tpu_custom_call.1} parent=51 // pred_region
          %s421 = sand.u32 %s57, 1
          %s422 = scalar_lea.sflag [#allocation3], %s421
          %s423 = sand.u32 %s57, 1
          %s424 = smul.addr %s423, 16
          %s425 = scalar_lea.vmem [#allocation2], %s424
          %s426 = smul.u32 2, %s40
          %s428 = ssub.s32 256, 256
          %429 = vsyncadd %s422, %s428
          %s430 = sadd.s32 %s41, %s426
          %s431 = smul.addr %s430, 128
          %s432 = scalar_lea.hbm %s0, %s431
          %s433 = sshll.u32 %s425, 4
          %s434 = int_to_ptr.vmem [resolvable:$true] %s433
          %439 = dma.hbm_to_vmem [thread:$0]  %s432, 256, %s434, %s422, 128, 128, 8
        $region56: #{tpu_custom_call.1} parent=51 // pred_fallthru
          _
        // Predicated region
        $region57: #{tpu_custom_call.1} parent=51 // pred_check
          %p440 = pneg %p93
        $region58: #{tpu_custom_call.1} parent=51 // pred_check_branch
          %442 = sbr.rel (%p440) target = $region60
        $region59: #{tpu_custom_call.1} parent=51 // pred_region
          %s443 = sand.u32 %s33, 1
          %s444 = scalar_lea.sflag [#allocation7], %s443
          %s445 = sand.u32 %s83, 1
          %s446 = smul.addr %s445, 2
          %s447 = scalar_lea.vmem [#allocation6], %s446
          %s448 = smul.u32 2, %s40
          %s450 = ssub.s32 32, 32
          %451 = vsyncadd %s444, %s450
          %s452 = smul.addr %s448, 16
          %s453 = scalar_lea.hbm %s1, %s452
          %s454 = sshll.u32 %s447, 4
          %s455 = int_to_ptr.vmem [resolvable:$true] %s454
          %460 = dma.hbm_to_vmem [thread:$0]  %s453, 32, %s455, %s444, 16, 16, 1
        $region60: #{tpu_custom_call.1} parent=51 // pred_fallthru
          _
      $region52: #{tpu_custom_call.1} parent=5 // pred_fallthru
        _
      %p461 = scmp.le.s32.totalorder 1, %s33
      %p462 = scmp.lt.s32.totalorder %s33, 3
      %p463 = pnand %p461, %p462
      %p464 = pneg %p463
      // Predicated region
      $region61: #{tpu_custom_call.1} parent=5 // pred_check
        _
      $region62: #{tpu_custom_call.1} parent=5 // pred_check_branch
        %466 = sbr.rel (%p463) target = $region64
      $region63: #{tpu_custom_call.1} parent=5 // pred_region
        %s467 = ssub.s32 %s33, 1
        %s468 = sand.u32 %s60, 1
        %s469 = scalar_lea.sflag [#allocation3], %s468
        %s470 = sand.u32 %s60, 1
        %s471 = smul.addr %s470, 16
        %s472 = scalar_lea.vmem [#allocation2], %s471
        // Predicated region
        $region65: #{tpu_custom_call.1} parent=63 // pred_check
          %p473 = pneg %p73
        $region66: #{tpu_custom_call.1} parent=63 // pred_check_branch
          %475 = sbr.rel (%p473) target = $region68
        $region67: #{tpu_custom_call.1} parent=63 // pred_region
          %476 = dma.done %s469, 256
        $region68: #{tpu_custom_call.1} parent=63 // pred_fallthru
          _
        %s477 = sand.u32 %s38, 1
        %s478 = scalar_lea.sflag [#allocation7], %s477
        %s479 = sand.u32 %s86, 1
        %s480 = smul.addr %s479, 2
        %s481 = scalar_lea.vmem [#allocation6], %s480
        // Predicated region
        $region69: #{tpu_custom_call.1} parent=63 // pred_check
          %p482 = pneg %p99
        $region70: #{tpu_custom_call.1} parent=63 // pred_check_branch
          %484 = sbr.rel (%p482) target = $region72
        $region71: #{tpu_custom_call.1} parent=63 // pred_region
          %485 = dma.done %s478, 32
        $region72: #{tpu_custom_call.1} parent=63 // pred_fallthru
          _
        // Predicated region
        $region73: #{tpu_custom_call.1} parent=63 // pred_check
          %p486 = pneg %p120
        $region74: #{tpu_custom_call.1} parent=63 // pred_check_branch
          %488 = sbr.rel (%p486) target = $region76
        $region75: #{tpu_custom_call.1} parent=63 // pred_region
          %489 = dma.done [#allocation7], 256
        $region76: #{tpu_custom_call.1} parent=63 // pred_fallthru
          _
        // Predicated region
        $region77: #{tpu_custom_call.1} parent=63 // pred_check
          %p490 = pneg %p183
        $region78: #{tpu_custom_call.1} parent=63 // pred_check_branch
          %492 = sbr.rel (%p490) target = $region80
        $region79: #{tpu_custom_call.1} parent=63 // pred_region
          %493 = dma.done [#allocation10], 512
        $region80: #{tpu_custom_call.1} parent=63 // pred_fallthru
          _
        // Predicated region
        $region81: #{tpu_custom_call.1} parent=63 // pred_check
          %p494 = pneg %p288
        $region82: #{tpu_custom_call.1} parent=63 // pred_check_branch
          %496 = sbr.rel (%p494) target = $region84
        $region83: #{tpu_custom_call.1} parent=63 // pred_region
          %497 = dma.done [#allocation5], 16
        $region84: #{tpu_custom_call.1} parent=63 // pred_fallthru
          _
        %498 = sfence
        %s499 = sand.u32 %s60, 1
        %s500 = scalar_lea.sflag [#allocation3], %s499
        %s501 = sand.u32 %s60, 1
        %s502 = smul.addr %s501, 16
        %s503 = scalar_lea.vmem [#allocation2], %s502
        %p504 = pneg %p73
        %p505 = pneg %p70
        %s506 = sand.u32 %s38, 1
        %s507 = scalar_lea.sflag [#allocation7], %s506
        %s508 = sand.u32 %s86, 1
        %s509 = smul.addr %s508, 2
        %s510 = scalar_lea.vmem [#allocation6], %s509
        %p511 = pneg %p99
        %p512 = pneg %p96
        %p513 = pneg %p120
        %p514 = pneg %p117
        %p515 = pneg %p141
        %p516 = pneg %p138
        %p517 = pneg %p162
        %p518 = pneg %p159
        %p519 = pneg %p183
        %p520 = pneg %p180
        %p521 = pneg %p204
        %p522 = pneg %p201
        %p523 = pneg %p225
        %p524 = pneg %p222
        %p525 = pneg %p246
        %p526 = pneg %p243
        %p527 = pneg %p267
        %p528 = pneg %p264
        %p529 = pneg %p288
        %p530 = pneg %p285
        %p531 = pneg %p316
        %p532 = pneg %p313
        %s533 = sand.u32 %s303, 1
        %s534 = scalar_lea.sflag [#allocation4], %s533
        %s535 = sand.u32 %s303, 1
        %s536 = smul.addr %s535, 2
        %s537 = scalar_lea.vmem [#allocation12], %s536
        %p538 = pneg %p344
        %p539 = pneg %p341
        %s540 = sand.u32 %s331, 1
        %s541 = scalar_lea.sflag [#allocation14], %s540
        %s542 = sand.u32 %s331, 1
        %s543 = smul.addr %s542, 2
        %s544 = scalar_lea.vmem [#allocation13], %s543
        %s545 = smul.u32 2, %s42
        %s546 = smul.u32 2, %s42
        %s547 = smul.u32 2, %s42
        %s548 = smul.u32 2, %s42
        %v549 = vld [vmem:[%s472] sm:$0xff]
        %v550 = vld [vmem:[%s472 + $0x8] sm:$0xff]
        %v551 = vld [vmem:[#allocation8] sm:$0xff]
        %v552 = vld [vmem:[#allocation8 + $0x8] sm:$0xff]
        %vm553 = vcmask 130048
        %v555 = vsel %vm553, %v549, 0
        %v558 = vsel %vm553, %v550, 0
        %560 = vmatprep.subr.mxu0 0.0
        %561 = vmatpush1.msra.mxu0 %v551
        %562 = vmatprep.subr.mxu0 0.0
        %563 = vmatpush1.msra.mxu0 %v552
        %564 = vmatprep.subr.mxu0 0.0
        %565 = vmatpush1.msra.mxu0 0.0
        %566 = vmatprep.subr.mxu0 0.0
        %567 = vmatpush1.msra.mxu0 0.0
        %568 = vmatprep.subr.mxu0 0.0
        %569 = vmatpush1.msra.mxu0 0.0
        %570 = vmatprep.subr.mxu0 0.0
        %571 = vmatpush1.msra.mxu0 0.0
        %572 = vmatprep.subr.mxu0 0.0
        %573 = vmatpush1.msra.mxu0 0.0
        %574 = vmatprep.subr.mxu0 0.0
        %575 = vmatpush1.msra.mxu0 0.0
        %576 = vmatprep.subr.mxu0 0.0
        %577 = vmatpush1.msra.mxu0 0.0
        %578 = vmatprep.subr.mxu0 0.0
        %579 = vmatpush1.msra.mxu0 0.0
        %580 = vmatprep.subr.mxu0 0.0
        %581 = vmatpush1.msra.mxu0 0.0
        %582 = vmatprep.subr.mxu0 0.0
        %583 = vmatpush1.msra.mxu0 0.0
        %584 = vmatprep.subr.mxu0 0.0
        %585 = vmatpush1.msra.mxu0 0.0
        %586 = vmatprep.subr.mxu0 0.0
        %587 = vmatpush1.msra.mxu0 0.0
        %588 = vmatprep.subr.mxu0 0.0
        %589 = vmatpush1.msra.mxu0 0.0
        %590 = vmatprep.subr.mxu0 0.0
        %591 = vmatpush1.msra.mxu0 0.0
        %592 = vmatprep.subr.mxu0 0.0
        %593 = vmatpush1.msra.mxu0 0.0
        %594 = vmatprep.subr.mxu0 0.0
        %595 = vmatpush1.msra.mxu0 0.0
        %596 = vmatprep.subr.mxu0 0.0
        %597 = vmatpush1.msra.mxu0 0.0
        %598 = vmatprep.subr.mxu0 0.0
        %599 = vmatpush1.msra.mxu0 0.0
        %600 = vmatprep.subr.mxu0 0.0
        %601 = vmatpush1.msra.mxu0 0.0
        %602 = vmatprep.subr.mxu0 0.0
        %603 = vmatpush1.msra.mxu0 0.0
        %604 = vmatprep.subr.mxu0 0.0
        %605 = vmatpush1.msra.mxu0 0.0
        %606 = vmatprep.subr.mxu0 0.0
        %607 = vmatpush1.msra.mxu0 0.0
        %608 = vmatprep.subr.mxu0 0.0
        %609 = vmatpush1.msra.mxu0 0.0
        %610 = vmatprep.subr.mxu0 0.0
        %611 = vmatpush1.msra.mxu0 0.0
        %612 = vmatprep.subr.mxu0 0.0
        %613 = vmatpush1.msra.mxu0 0.0
        %614 = vmatprep.subr.mxu0 0.0
        %615 = vmatpush1.msra.mxu0 0.0
        %616 = vmatprep.subr.mxu0 0.0
        %617 = vmatpush1.msra.mxu0 0.0
        %618 = vmatprep.subr.mxu0 0.0
        %619 = vmatpush1.msra.mxu0 0.0
        %620 = vmatprep.subr.mxu0 0.0
        %621 = vmatpush1.msra.mxu0 0.0
        %622 = vmatprep.subr.mxu0 0.0
        %623 = vmatpush1.msra.mxu0 0.0
        %624 = vmatprep.mubr.f32.mxu0 0.0
        %625 = vmatmul.mubr.f32.gmra.mrb[0].mxu0 %v555
        %v626 = vpop.f32.mrb[0].mxu0
        %v627 = vadd.f32 0.0, %v626
        %v628 = vpop.f32.mrb[0].mxu0
        %629 = vmatprep.mubr.f32.mxu0 0.0
        %630 = vmatmul.mubr.f32.gmra.mrb[0].mxu0 %v558
        %v631 = vpop.f32.mrb[0].mxu0
        %v632 = vadd.f32 0.0, %v631
        %v633 = vpop.f32.mrb[0].mxu0
        %634 = vdwg.mxu0
        %v635 = vld [vmem:[%s481] sm:$0x1]
        %v636 = vld [vmem:[%s481 + $0x1] sm:$0x1]
        %v639 = vlaneseq
        %v640 = vshrl.u32 %v639, 7
        %v641 = vsub.s32 0, %v640
        %v642 = vrot.slane %v635, %v641
        %v643 = vlaneseq
        %v644 = vshrl.u32 %v643, 7
        %v645 = vsub.s32 0, %v644
        %v646 = vrot.slane %v636, %v645
        %v649 = vadd.f32 %v627, %v642
        %v650 = vadd.f32 %v632, %v646
        %v651 = vld [vmem:[%s3] sm:$0x1]
        %v652 = vld [vmem:[%s4] sm:$0x1]
        %vm653 = vcmask 261120
        %v654 = vsel %vm653, %v649, 0.0
        %655 = vadd.xlane.f32.xlu0 %v654
        %v656 = vpop.xlane.xlu0 %655
        %v657 = vsel %vm653, %v650, 0.0
        %658 = vadd.xlane.f32.xlu0 %v657
        %v659 = vpop.xlane.xlu0 %658
        %v660 = vrcp.pop 32.0
        %v661 = vmul.f32 %v656, %v660
        %v662 = vmul.f32 %v659, %v660
        %v663 = vsub.f32 %v649, %v661
        %v664 = vsub.f32 %v650, %v662
        %v665 = vmul.f32 %v663, %v663
        %v666 = vmul.f32 %v664, %v664
        %v667 = vsel %vm653, %v665, 0.0
        %668 = vadd.xlane.f32.xlu0 %v667
        %v669 = vpop.xlane.xlu0 %668
        %v670 = vsel %vm653, %v666, 0.0
        %671 = vadd.xlane.f32.xlu0 %v670
        %v672 = vpop.xlane.xlu0 %671
        %v673 = vmul.f32 %v669, %v660
        %v674 = vmul.f32 %v672, %v660
        %v675 = vadd.f32 %v673, 1e-05
        %v676 = vadd.f32 %v674, 1e-05
        %v677 = vrsqrt.pop %v675
        %v678 = vrsqrt.pop %v676
        %v679 = vmul.f32 %v663, %v677
        %v680 = vmul.f32 %v664, %v678
        %v682 = vlaneseq
        %v683 = vshrl.u32 %v682, 7
        %v684 = vsub.s32 0, %v683
        %v685 = vrot.slane %v651, %v684
        %v687 = vmul.f32 %v679, %v685
        %v688 = vmul.f32 %v680, %v685
        %v690 = vlaneseq
        %v691 = vshrl.u32 %v690, 7
        %v692 = vsub.s32 0, %v691
        %v693 = vrot.slane %v652, %v692
        %v695 = vadd.f32 %v687, %v693
        %v696 = vadd.f32 %v688, %v693
        %v697 = vmul.f32 %v695, 0.5
        %v698 = vmul.f32 %v696, 0.5
        %v699 = vmul.f32 %v695, 0.70710677
        %v700 = vmul.f32 %v696, 0.70710677
        %v701 = verf.f32.pop %v699
        %v702 = verf.f32.pop %v700
        %v703 = vadd.f32 %v701, 1.0
        %v704 = vadd.f32 %v702, 1.0
        %v705 = vmul.f32 %v697, %v703
        %v706 = vmul.f32 %v698, %v704
        %v707 = vld [vmem:[#allocation9] sm:$0xff]
        %v708 = vld [vmem:[#allocation9 + $0x8] sm:$0xff]
        %v709 = vld [vmem:[#allocation9 + $0x10] sm:$0xff]
        %v710 = vld [vmem:[#allocation9 + $0x18] sm:$0xff]
        %v711 = vld [vmem:[%s6] sm:$0x1]
        %v713 = vlaneseq
        %v714 = vshrl.u32 %v713, 7
        %v715 = vsub.s32 0, %v714
        %v716 = vrot.slane %v711, %v715
        %v719 = vsel %vm653, %v705, 0
        %v722 = vsel %vm653, %v706, 0
        %724 = vmatprep.subr.mxu0 0.0
        %725 = vmatpush1.msra.mxu0 %v707
        %726 = vmatprep.subr.mxu0 0.0
        %727 = vmatpush1.msra.mxu0 %v708
        %728 = vmatprep.subr.mxu0 0.0
        %729 = vmatpush1.msra.mxu0 %v709
        %730 = vmatprep.subr.mxu0 0.0
        %731 = vmatpush1.msra.mxu0 %v710
        %732 = vmatprep.subr.mxu0 0.0
        %733 = vmatpush1.msra.mxu0 0.0
        %734 = vmatprep.subr.mxu0 0.0
        %735 = vmatpush1.msra.mxu0 0.0
        %736 = vmatprep.subr.mxu0 0.0
        %737 = vmatpush1.msra.mxu0 0.0
        %738 = vmatprep.subr.mxu0 0.0
        %739 = vmatpush1.msra.mxu0 0.0
        %740 = vmatprep.subr.mxu0 0.0
        %741 = vmatpush1.msra.mxu0 0.0
        %742 = vmatprep.subr.mxu0 0.0
        %743 = vmatpush1.msra.mxu0 0.0
        %744 = vmatprep.subr.mxu0 0.0
        %745 = vmatpush1.msra.mxu0 0.0
        %746 = vmatprep.subr.mxu0 0.0
        %747 = vmatpush1.msra.mxu0 0.0
        %748 = vmatprep.subr.mxu0 0.0
        %749 = vmatpush1.msra.mxu0 0.0
        %750 = vmatprep.subr.mxu0 0.0
        %751 = vmatpush1.msra.mxu0 0.0
        %752 = vmatprep.subr.mxu0 0.0
        %753 = vmatpush1.msra.mxu0 0.0
        %754 = vmatprep.subr.mxu0 0.0
        %755 = vmatpush1.msra.mxu0 0.0
        %756 = vmatprep.subr.mxu0 0.0
        %757 = vmatpush1.msra.mxu0 0.0
        %758 = vmatprep.subr.mxu0 0.0
        %759 = vmatpush1.msra.mxu0 0.0
        %760 = vmatprep.subr.mxu0 0.0
        %761 = vmatpush1.msra.mxu0 0.0
        %762 = vmatprep.subr.mxu0 0.0
        %763 = vmatpush1.msra.mxu0 0.0
        %764 = vmatprep.subr.mxu0 0.0
        %765 = vmatpush1.msra.mxu0 0.0
        %766 = vmatprep.subr.mxu0 0.0
        %767 = vmatpush1.msra.mxu0 0.0
        %768 = vmatprep.subr.mxu0 0.0
        %769 = vmatpush1.msra.mxu0 0.0
        %770 = vmatprep.subr.mxu0 0.0
        %771 = vmatpush1.msra.mxu0 0.0
        %772 = vmatprep.subr.mxu0 0.0
        %773 = vmatpush1.msra.mxu0 0.0
        %774 = vmatprep.subr.mxu0 0.0
        %775 = vmatpush1.msra.mxu0 0.0
        %776 = vmatprep.subr.mxu0 0.0
        %777 = vmatpush1.msra.mxu0 0.0
        %778 = vmatprep.subr.mxu0 0.0
        %779 = vmatpush1.msra.mxu0 0.0
        %780 = vmatprep.subr.mxu0 0.0
        %781 = vmatpush1.msra.mxu0 0.0
        %782 = vmatprep.subr.mxu0 0.0
        %783 = vmatpush1.msra.mxu0 0.0
        %784 = vmatprep.subr.mxu0 0.0
        %785 = vmatpush1.msra.mxu0 0.0
        %786 = vmatprep.subr.mxu0 0.0
        %787 = vmatpush1.msra.mxu0 0.0
        %788 = vmatprep.mubr.f32.mxu0 0.0
        %789 = vmatmul.mubr.f32.gmra.mrb[0].mxu0 %v719
        %v790 = vpop.f32.mrb[0].mxu0
        %v791 = vadd.f32 %v716, %v790
        %v792 = vpop.f32.mrb[0].mxu0
        %793 = vmatprep.mubr.f32.mxu0 0.0
        %794 = vmatmul.mubr.f32.gmra.mrb[0].mxu0 %v722
        %v795 = vpop.f32.mrb[0].mxu0
        %v796 = vadd.f32 %v716, %v795
        %v797 = vpop.f32.mrb[0].mxu0
        %798 = vdwg.mxu0
        %v799 = vld [vmem:[%s7] sm:$0x1]
        %v800 = vld [vmem:[%s8] sm:$0x1]
        %v801 = vsel %vm653, %v791, 0.0
        %802 = vadd.xlane.f32.xlu0 %v801
        %v803 = vpop.xlane.xlu0 %802
        %v804 = vsel %vm653, %v796, 0.0
        %805 = vadd.xlane.f32.xlu0 %v804
        %v806 = vpop.xlane.xlu0 %805
        %v807 = vmul.f32 %v803, %v660
        %v808 = vmul.f32 %v806, %v660
        %v809 = vsub.f32 %v791, %v807
        %v810 = vsub.f32 %v796, %v808
        %v811 = vmul.f32 %v809, %v809
        %v812 = vmul.f32 %v810, %v810
        %v813 = vsel %vm653, %v811, 0.0
        %814 = vadd.xlane.f32.xlu0 %v813
        %v815 = vpop.xlane.xlu0 %814
        %v816 = vsel %vm653, %v812, 0.0
        %817 = vadd.xlane.f32.xlu0 %v816
        %v818 = vpop.xlane.xlu0 %817
        %v819 = vmul.f32 %v815, %v660
        %v820 = vmul.f32 %v818, %v660
        %v821 = vadd.f32 %v819, 1e-05
        %v822 = vadd.f32 %v820, 1e-05
        %v823 = vrsqrt.pop %v821
        %v824 = vrsqrt.pop %v822
        %v825 = vmul.f32 %v809, %v823
        %v826 = vmul.f32 %v810, %v824
        %v828 = vlaneseq
        %v829 = vshrl.u32 %v828, 7
        %v830 = vsub.s32 0, %v829
        %v831 = vrot.slane %v799, %v830
        %v833 = vmul.f32 %v825, %v831
        %v834 = vmul.f32 %v826, %v831
        %v836 = vlaneseq
        %v837 = vshrl.u32 %v836, 7
        %v838 = vsub.s32 0, %v837
        %v839 = vrot.slane %v800, %v838
        %v841 = vadd.f32 %v833, %v839
        %v842 = vadd.f32 %v834, %v839
        %v843 = vmul.f32 %v841, 0.5
        %v844 = vmul.f32 %v842, 0.5
        %v845 = vmul.f32 %v841, 0.70710677
        %v846 = vmul.f32 %v842, 0.70710677
        %v847 = verf.f32.pop %v845
        %v848 = verf.f32.pop %v846
        %v849 = vadd.f32 %v847, 1.0
        %v850 = vadd.f32 %v848, 1.0
        %v851 = vmul.f32 %v843, %v849
        %v852 = vmul.f32 %v844, %v850
        %v853 = vld [vmem:[%s9] sm:$0x1]
        %s854 = sld [smem:[#allocation11]]
        %v855 = vstv %s854
        %v857 = vsel %vm653, %v853, 0
        %v860 = vsel %vm653, %v851, 0
        %862 = vmatprep.subr.mxu0 0.0
        %863 = vmatpush1.xpose.msra.mxu0 %v860
        %864 = vmatprep.subr.mxu0 0.0
        %865 = vmatpush1.xpose.msra.mxu0 0.0
        %866 = vmatprep.subr.mxu0 0.0
        %867 = vmatpush1.xpose.msra.mxu0 0.0
        %868 = vmatprep.subr.mxu0 0.0
        %869 = vmatpush1.xpose.msra.mxu0 0.0
        %870 = vmatprep.subr.mxu0 0.0
        %871 = vmatpush1.xpose.msra.mxu0 0.0
        %872 = vmatprep.subr.mxu0 0.0
        %873 = vmatpush1.xpose.msra.mxu0 0.0
        %874 = vmatprep.subr.mxu0 0.0
        %875 = vmatpush1.xpose.msra.mxu0 0.0
        %876 = vmatprep.subr.mxu0 0.0
        %877 = vmatpush1.xpose.msra.mxu0 0.0
        %878 = vmatprep.subr.mxu0 0.0
        %879 = vmatpush1.xpose.msra.mxu0 0.0
        %880 = vmatprep.subr.mxu0 0.0
        %881 = vmatpush1.xpose.msra.mxu0 0.0
        %882 = vmatprep.subr.mxu0 0.0
        %883 = vmatpush1.xpose.msra.mxu0 0.0
        %884 = vmatprep.subr.mxu0 0.0
        %885 = vmatpush1.xpose.msra.mxu0 0.0
        %886 = vmatprep.subr.mxu0 0.0
        %887 = vmatpush1.xpose.msra.mxu0 0.0
        %888 = vmatprep.subr.mxu0 0.0
        %889 = vmatpush1.xpose.msra.mxu0 0.0
        %890 = vmatprep.subr.mxu0 0.0
        %891 = vmatpush1.xpose.msra.mxu0 0.0
        %892 = vmatprep.subr.mxu0 0.0
        %893 = vmatpush1.xpose.msra.mxu0 0.0
        %894 = vmatprep.subr.mxu0 0.0
        %895 = vmatpush1.xpose.msra.mxu0 0.0
        %896 = vmatprep.subr.mxu0 0.0
        %897 = vmatpush1.xpose.msra.mxu0 0.0
        %898 = vmatprep.subr.mxu0 0.0
        %899 = vmatpush1.xpose.msra.mxu0 0.0
        %900 = vmatprep.subr.mxu0 0.0
        %901 = vmatpush1.xpose.msra.mxu0 0.0
        %902 = vmatprep.subr.mxu0 0.0
        %903 = vmatpush1.xpose.msra.mxu0 0.0
        %904 = vmatprep.subr.mxu0 0.0
        %905 = vmatpush1.xpose.msra.mxu0 0.0
        %906 = vmatprep.subr.mxu0 0.0
        %907 = vmatpush1.xpose.msra.mxu0 0.0
        %908 = vmatprep.subr.mxu0 0.0
        %909 = vmatpush1.xpose.msra.mxu0 0.0
        %910 = vmatprep.subr.mxu0 0.0
        %911 = vmatpush1.xpose.msra.mxu0 0.0
        %912 = vmatprep.subr.mxu0 0.0
        %913 = vmatpush1.xpose.msra.mxu0 0.0
        %914 = vmatprep.subr.mxu0 0.0
        %915 = vmatpush1.xpose.msra.mxu0 0.0
        %916 = vmatprep.subr.mxu0 0.0
        %917 = vmatpush1.xpose.msra.mxu0 0.0
        %918 = vmatprep.subr.mxu0 0.0
        %919 = vmatpush1.xpose.msra.mxu0 0.0
        %920 = vmatprep.subr.mxu0 0.0
        %921 = vmatpush1.xpose.msra.mxu0 0.0
        %922 = vmatprep.subr.mxu0 0.0
        %923 = vmatpush1.xpose.msra.mxu0 0.0
        %924 = vmatprep.subr.mxu0 0.0
        %925 = vmatpush1.xpose.msra.mxu0 0.0
        %926 = vmatprep.mubr.f32.mxu0 0.0
        %927 = vmatmul.mubr.f32.gmra.mrb[0].mxu0 %v857
        %v928 = vpop.f32.mrb[0].mxu0
        %v929 = vadd.f32 %v855, %v928
        %v930 = vpop.f32.mrb[0].mxu0
        %931 = vdwg.mxu0
        %v933 = vsel %vm653, %v852, 0
        %935 = vmatprep.subr.mxu0 0.0
        %936 = vmatpush1.xpose.msra.mxu0 %v933
        %937 = vmatprep.subr.mxu0 0.0
        %938 = vmatpush1.xpose.msra.mxu0 0.0
        %939 = vmatprep.subr.mxu0 0.0
        %940 = vmatpush1.xpose.msra.mxu0 0.0
        %941 = vmatprep.subr.mxu0 0.0
        %942 = vmatpush1.xpose.msra.mxu0 0.0
        %943 = vmatprep.subr.mxu0 0.0
        %944 = vmatpush1.xpose.msra.mxu0 0.0
        %945 = vmatprep.subr.mxu0 0.0
        %946 = vmatpush1.xpose.msra.mxu0 0.0
        %947 = vmatprep.subr.mxu0 0.0
        %948 = vmatpush1.xpose.msra.mxu0 0.0
        %949 = vmatprep.subr.mxu0 0.0
        %950 = vmatpush1.xpose.msra.mxu0 0.0
        %951 = vmatprep.subr.mxu0 0.0
        %952 = vmatpush1.xpose.msra.mxu0 0.0
        %953 = vmatprep.subr.mxu0 0.0
        %954 = vmatpush1.xpose.msra.mxu0 0.0
        %955 = vmatprep.subr.mxu0 0.0
        %956 = vmatpush1.xpose.msra.mxu0 0.0
        %957 = vmatprep.subr.mxu0 0.0
        %958 = vmatpush1.xpose.msra.mxu0 0.0
        %959 = vmatprep.subr.mxu0 0.0
        %960 = vmatpush1.xpose.msra.mxu0 0.0
        %961 = vmatprep.subr.mxu0 0.0
        %962 = vmatpush1.xpose.msra.mxu0 0.0
        %963 = vmatprep.subr.mxu0 0.0
        %964 = vmatpush1.xpose.msra.mxu0 0.0
        %965 = vmatprep.subr.mxu0 0.0
        %966 = vmatpush1.xpose.msra.mxu0 0.0
        %967 = vmatprep.subr.mxu0 0.0
        %968 = vmatpush1.xpose.msra.mxu0 0.0
        %969 = vmatprep.subr.mxu0 0.0
        %970 = vmatpush1.xpose.msra.mxu0 0.0
        %971 = vmatprep.subr.mxu0 0.0
        %972 = vmatpush1.xpose.msra.mxu0 0.0
        %973 = vmatprep.subr.mxu0 0.0
        %974 = vmatpush1.xpose.msra.mxu0 0.0
        %975 = vmatprep.subr.mxu0 0.0
        %976 = vmatpush1.xpose.msra.mxu0 0.0
        %977 = vmatprep.subr.mxu0 0.0
        %978 = vmatpush1.xpose.msra.mxu0 0.0
        %979 = vmatprep.subr.mxu0 0.0
        %980 = vmatpush1.xpose.msra.mxu0 0.0
        %981 = vmatprep.subr.mxu0 0.0
        %982 = vmatpush1.xpose.msra.mxu0 0.0
        %983 = vmatprep.subr.mxu0 0.0
        %984 = vmatpush1.xpose.msra.mxu0 0.0
        %985 = vmatprep.subr.mxu0 0.0
        %986 = vmatpush1.xpose.msra.mxu0 0.0
        %987 = vmatprep.subr.mxu0 0.0
        %988 = vmatpush1.xpose.msra.mxu0 0.0
        %989 = vmatprep.subr.mxu0 0.0
        %990 = vmatpush1.xpose.msra.mxu0 0.0
        %991 = vmatprep.subr.mxu0 0.0
        %992 = vmatpush1.xpose.msra.mxu0 0.0
        %993 = vmatprep.subr.mxu0 0.0
        %994 = vmatpush1.xpose.msra.mxu0 0.0
        %995 = vmatprep.subr.mxu0 0.0
        %996 = vmatpush1.xpose.msra.mxu0 0.0
        %997 = vmatprep.subr.mxu0 0.0
        %998 = vmatpush1.xpose.msra.mxu0 0.0
        %999 = vmatprep.mubr.f32.mxu0 0.0
        %1000 = vmatmul.mubr.f32.gmra.mrb[0].mxu0 %v857
        %v1001 = vpop.f32.mrb[0].mxu0
        %v1002 = vadd.f32 %v855, %v1001
        %v1003 = vpop.f32.mrb[0].mxu0
        %1004 = vdwg.mxu0
        %s1005 = sld [smem:[#allocation11 + $0x1]]
        %v1006 = vstv %s1005
        %v1007 = vsub.f32 %v929, %v1006
        %v1008 = vsub.f32 %v1002, %v1006
        %v1009 = vmul.f32 %v1007, 10.0
        %v1010 = vmul.f32 %v1008, 10.0
        %v1011 = vxor.u32 %v1009, 2147483648
        %v1012 = vxor.u32 %v1010, 2147483648
        %v1013 = vmul.f32 %v1011, 1.442695
        %v1014 = vpow.pop %v1013
        %v1015 = vmul.f32 %v1012, 1.442695
        %v1016 = vpow.pop %v1015
        %v1017 = vadd.f32 %v1014, 1.0
        %v1018 = vadd.f32 %v1016, 1.0
        %v1019 = vrcp.pop %v1017
        %v1020 = vmul.f32 1.0, %v1019
        %v1021 = vrcp.pop %v1018
        %v1022 = vmul.f32 1.0, %v1021
        %v1023 = vmax.f32 %v1020, 1e-05
        %v1024 = vmax.f32 %v1022, 1e-05
        %v1025 = vmin.f32 %v1023, 1.0
        %v1026 = vmin.f32 %v1024, 1.0
        %vm1027 = vcmask 57344
        %1028 = vst.msk [vmem:[%s537] sm:$0x1] %vm1027, %v929
        %1029 = vst.msk [vmem:[%s537 + $0x1] sm:$0x1] %vm1027, %v1002
        %1030 = vst.msk [vmem:[%s544] sm:$0x1] %vm1027, %v1025
        %1031 = vst.msk [vmem:[%s544 + $0x1] sm:$0x1] %vm1027, %v1026
        %s1032 = sand.u32 %s303, 1
        %s1033 = scalar_lea.sflag [#allocation4], %s1032
        %s1034 = sand.u32 %s303, 1
        %s1035 = smul.addr %s1034, 2
        %s1036 = scalar_lea.vmem [#allocation12], %s1035
        %s1037 = sand.u32 %s331, 1
        %s1038 = scalar_lea.sflag [#allocation14], %s1037
        %s1039 = sand.u32 %s331, 1
        %s1040 = smul.addr %s1039, 2
        %s1041 = scalar_lea.vmem [#allocation13], %s1040
        // Predicated region
        $region85: #{tpu_custom_call.1} parent=63 // pred_check
          %p1042 = pneg %p313
        $region86: #{tpu_custom_call.1} parent=63 // pred_check_branch
          %1044 = sbr.rel (%p1042) target = $region88
        $region87: #{tpu_custom_call.1} parent=63 // pred_region
          %s1045 = smul.u32 2, %s42
          %s1047 = ssub.s32 32, 32
          %1048 = vsyncadd %s1033, %s1047
          %s1049 = sadd.s32 %s43, %s1045
          %s1050 = smul.addr %s1049, 16
          %s1051 = scalar_lea.hbm %s11, %s1050
          %s1052 = sshll.u32 %s1036, 4
          %s1053 = int_to_ptr.vmem [resolvable:$true] %s1052
          %1058 = dma.vmem_to_hbm [thread:$0]  %s1053, 32, %s1051, %s1033, 16, 16, 1
        $region88: #{tpu_custom_call.1} parent=63 // pred_fallthru
          _
        // Predicated region
        $region89: #{tpu_custom_call.1} parent=63 // pred_check
          %p1059 = pneg %p341
        $region90: #{tpu_custom_call.1} parent=63 // pred_check_branch
          %1061 = sbr.rel (%p1059) target = $region92
        $region91: #{tpu_custom_call.1} parent=63 // pred_region
          %s1062 = smul.u32 2, %s42
          %s1064 = ssub.s32 32, 32
          %1065 = vsyncadd %s1038, %s1064
          %s1066 = sadd.s32 %s43, %s1062
          %s1067 = smul.addr %s1066, 16
          %s1068 = scalar_lea.hbm %s12, %s1067
          %s1069 = sshll.u32 %s1041, 4
          %s1070 = int_to_ptr.vmem [resolvable:$true] %s1069
          %1075 = dma.vmem_to_hbm [thread:$0]  %s1070, 32, %s1068, %s1038, 16, 16, 1
        $region92: #{tpu_custom_call.1} parent=63 // pred_fallthru
          _
      $region64: #{tpu_custom_call.1} parent=5 // pred_fallthru
        _
      %p1076 = scmp.le.s32.totalorder 2, %s33
      // Predicated region
      $region93: #{tpu_custom_call.1} parent=5 // pred_check
        %p1077 = pneg %p1076
      $region94: #{tpu_custom_call.1} parent=5 // pred_check_branch
        %1079 = sbr.rel (%p1077) target = $region96
      $region95: #{tpu_custom_call.1} parent=5 // pred_region
        %s1080 = ssub.s32 %s33, 2
        // Predicated region
        $region97: #{tpu_custom_call.1} parent=95 // pred_check
          %p1081 = pneg %p319
        $region98: #{tpu_custom_call.1} parent=95 // pred_check_branch
          %1083 = sbr.rel (%p1081) target = $region100
        $region99: #{tpu_custom_call.1} parent=95 // pred_region
          %s1084 = sand.u32 %s304, 1
          %s1085 = scalar_lea.sflag [#allocation4], %s1084
          %s1086 = sand.u32 %s304, 1
          %s1087 = smul.addr %s1086, 2
          %s1088 = scalar_lea.vmem [#allocation12], %s1087
          %1089 = dma.done %s1085, 32
        $region100: #{tpu_custom_call.1} parent=95 // pred_fallthru
          _
        // Predicated region
        $region101: #{tpu_custom_call.1} parent=95 // pred_check
          %p1090 = pneg %p347
        $region102: #{tpu_custom_call.1} parent=95 // pred_check_branch
          %1092 = sbr.rel (%p1090) target = $region104
        $region103: #{tpu_custom_call.1} parent=95 // pred_region
          %s1093 = sand.u32 %s332, 1
          %s1094 = scalar_lea.sflag [#allocation14], %s1093
          %s1095 = sand.u32 %s332, 1
          %s1096 = smul.addr %s1095, 2
          %s1097 = scalar_lea.vmem [#allocation13], %s1096
          %1098 = dma.done %s1094, 32
        $region104: #{tpu_custom_call.1} parent=95 // pred_fallthru
          _
      $region96: #{tpu_custom_call.1} parent=5 // pred_fallthru
        _
    $region6: #{tpu_custom_call.1} parent=1 // loop_footer
      %s37 = sadd.s32 1, %s33
    $region7: #{tpu_custom_call.1} parent=1 // loop_footer_branch
      %32 = sbr.rel target = $region3
    $region8: #{tpu_custom_call.1} parent=1 // loop_exit
      _
    %1099 = vsyncpa [#allocation3], 1
    %s1100 = scalar_lea.sflag [#allocation3], 1
    %1101 = vsyncpa %s1100, 1
    %1102 = vsyncpa [#allocation7], 1
    %s1103 = scalar_lea.sflag [#allocation7], 1
    %1104 = vsyncpa %s1103, 1
    %1105 = vsyncpa [#allocation10], 1
    %1106 = vsyncpa [#allocation4], 1
    %s1107 = scalar_lea.sflag [#allocation4], 1
    %1108 = vsyncpa %s1107, 1
    %1109 = vsyncpa [#allocation14], 1
    %s1110 = scalar_lea.sflag [#allocation14], 1
    %1111 = vsyncpa %s1110, 1
    %1112 = vsyncpa [#allocation5], 1
    %s1113 = scalar_lea.sflag [#allocation5], 1
    %1114 = vsyncpa %s1113, 1

</llo_original>
